<compile_context>
chip_gen: v7x
topology: tpu7x:2x2x1
jax: 0.10.0
libtpu: 0.0.40
codegen_flags: <defaults>
</compile_context>

<pallas_src>
import functools

import numpy as np
import jax
import jax.numpy as jnp
from jax.experimental import pallas as pl
from jax.experimental.pallas import tpu as pltpu


def _volume_render_kernel(depth_ref, density_ref, feat_ref, tri_ref, red_ref,
                          out_ref, *, n_pts):
    depth = depth_ref[...]        # (C, W)   W = pack * n_pts, `pack` rays/row
    density = density_ref[...]    # (C, W)
    C, W = depth.shape

    # deltas[i] = depth[i+1] - depth[i]; last sample of every packed ray gets
    # the 1e10 sentinel.  roll(W-1) == roll(-1): a single XLU op, no
    # lane-offset slice/concat relayout.
    lane = jax.lax.broadcasted_iota(jnp.int32, (C, W), 1)
    nxt = pltpu.roll(depth, shift=W - 1, axis=1)          # nxt[:, i] = depth[:, i+1 mod W]
    deltas = jnp.where(lane % n_pts == n_pts - 1, jnp.float32(1e10),
                       nxt - depth)                        # (C, W)

    sigma_delta = density * deltas                         # (C, W)

    # Exclusive prefix sum within each packed ray on the MXU:
    #   cum[:, i] = sum_{j<i, same ray} sigma_delta[:, j]
    # tri is block-diagonal strictly-upper, so its "last sample" rows are all
    # zero and the 1e10 sentinel never enters the accumulation.  Keep f32.
    cum = jnp.dot(sigma_delta, tri_ref[...], preferred_element_type=jnp.float32)

    # weights = T * alpha = exp(-cum) - exp(-(cum + sigma_delta))  (2 EUP exps)
    weights = jnp.exp(-cum) - jnp.exp(-(cum + sigma_delta))        # (C, W)

    # Fused per-ray reductions: one MXU matmul against a 0/1 block matrix that
    # both splits the packed rays and routes each value (f0,f1,f2,depth) to its
    # output column.  Keeps the (only 2 on v6e/v7x) XLUs free of 4 reduces.
    prod = jnp.concatenate(
        [feat_ref[0] * weights, feat_ref[1] * weights, feat_ref[2] * weights,
         depth * weights], axis=-1)                        # (C, 4W)
    out_ref[...] = jnp.dot(prod, red_ref[...],
                           preferred_element_type=jnp.float32)  # (C, 4*pack)


def volume_render(depth_values, density, feature, *, chunk_size=2048):
    """Pallas equivalent of VolumeRenderer.forward given the sampler /
    implicit_fn outputs (depth_values, density, feature).

    `feature` is preferably channel-first (3, N, P); an (N, P, 3) input is also
    accepted but costs an extra HBM transpose before the kernel runs.
    """
    depth_values = jnp.asarray(depth_values, jnp.float32)
    density = jnp.asarray(density, jnp.float32)
    N, P = depth_values.shape
    assert density.shape == (N, P)

    if feature.shape == (3, N, P):
        feat_cf = jnp.asarray(feature, jnp.float32)
    elif feature.shape == (N, P, 3):
        # TODO(synk): prefer emitting channel-first from implicit_fn; this
        # transpose is a full HBM round-trip of the (largest) input tensor.
        feat_cf = jnp.transpose(jnp.asarray(feature, jnp.float32), (2, 0, 1))
    else:
        raise ValueError(f"unexpected feature shape {feature.shape}")

    # ---- lane packing: pack `pack` rays side by side on the 128-lane axis ----
    pack = 128 // P if (P <= 128 and 128 % P == 0) else 1
    W = pack * P

    # Rows of the packed array per grid step (rays/step = pack * rows).
    half = -(-N // pack)                                   # packed rows needed
    rows = max(8, (min(max(chunk_size, pack) // pack, half) // 8) * 8)
    if half > 8:
        # keep >= 2 grid steps so the single "parallel" axis can still be
        # sharded across v7x's two TensorCores.
        rows = min(rows, (((half + 1) // 2) + 7) // 8 * 8)
    grid_len = -(-half // rows)
    half_p = grid_len * rows
    Np = half_p * pack
    pad = Np - N
    if pad:  # padded rays have density = 0 -> weights = 0 -> zero outputs
        depth_values = jnp.pad(depth_values, ((0, pad), (0, 0)))
        density = jnp.pad(density, ((0, pad), (0, 0)))
        feat_cf = jnp.pad(feat_cf, ((0, 0), (0, pad), (0, 0)))

    # Free row-major reshapes: row r = rays [pack*r, ..., pack*r + pack - 1].
    depth_pk = depth_values.reshape(half_p, W)
    dens_pk = density.reshape(half_p, W)
    feat_pk = feat_cf.reshape(3, half_p, W)

    # ---- resident constants (constant index_map -> loaded once) ----
    # Block-diagonal strictly-upper prefix-sum matrix: tri[j,i]=1 iff j<i and
    # both indices fall in the same ray's P-sample block.
    tri_blk = np.triu(np.ones((P, P), np.float32), k=1)
    tri = jnp.asarray(np.kron(np.eye(pack, dtype=np.float32), tri_blk))  # (W, W)

    # Reduction/routing matrix for the fused output matmul: value v of packed
    # sub-ray q (lanes [q*P, (q+1)*P) of slab v) -> output column q*4 + v.
    red_np = np.zeros((4 * W, 4 * pack), np.float32)
    for v in range(4):
        for q in range(pack):
            red_np[v * W + q * P: v * W + (q + 1) * P, q * 4 + v] = 1.0
    red = jnp.asarray(red_np)

    # Advisory cost estimate: this kernel is HBM-bound.
    bytes_accessed = int(4 * (5 * half_p * W + half_p * 4 * pack
                              + W * W + 4 * W * 4 * pack))
    flops = int(2 * half_p * W * W + 2 * half_p * (4 * W) * (4 * pack)
                + 10 * half_p * W)
    cost = pl.CostEstimate(flops=flops, transcendentals=int(2 * half_p * W),
                           bytes_accessed=bytes_accessed)

    out = pl.pallas_call(
        functools.partial(_volume_render_kernel, n_pts=P),
        out_shape=jax.ShapeDtypeStruct((half_p, 4 * pack), jnp.float32),
        grid_spec=pltpu.PrefetchScalarGridSpec(
            num_scalar_prefetch=0,
            grid=(grid_len,),
            in_specs=[
                pl.BlockSpec((rows, W), lambda i: (i, 0)),         # depth (packed)
                pl.BlockSpec((rows, W), lambda i: (i, 0)),         # density (packed)
                pl.BlockSpec((3, rows, W), lambda i: (0, i, 0)),   # feature (cf, packed)
                pl.BlockSpec((W, W), lambda i: (0, 0)),            # tri (resident)
                pl.BlockSpec((4 * W, 4 * pack), lambda i: (0, 0)), # red (resident)
            ],
            out_specs=pl.BlockSpec((rows, 4 * pack), lambda i: (i, 0)),
        ),
        compiler_params=pltpu.CompilerParams(
            dimension_semantics=("parallel",),
            # lifts v5e's 16 MiB default scoped-VMEM limit so large chunks fit;
            # 32 MiB == the v6e/v7x default, so it is a no-op there.
            vmem_limit_bytes=32 * 1024 * 1024),
        cost_estimate=cost,
    )(depth_pk, dens_pk, feat_pk, tri, red)

    out = out.reshape(Np, 4)          # free row-major unpack: row = one ray
    feat_out = out[:N, :3]
    depth_out = out[:N, 3:4]
    return {"feature": feat_out, "depth": depth_out}


def volume_render_ref(depth_values, density, feature_cf):
    """Pure-JAX reference, literal translation of the torch forward."""
    feature = jnp.transpose(feature_cf, (1, 2, 0))                 # (N, P, 3)
    deltas = jnp.concatenate(
        [depth_values[:, 1:] - depth_values[:, :-1],
         jnp.full_like(depth_values[:, :1], 1e10)], axis=-1)
    alpha = 1.0 - jnp.exp(-density * deltas)
    trans = jnp.cumprod(1.0 - alpha, axis=1)
    trans = jnp.concatenate([jnp.ones_like(trans[:, :1]), trans[:, :-1]], axis=-1)
    weights = trans * alpha
    feat = jnp.sum(feature * weights[:, :, None], axis=1)
    depth = jnp.sum(depth_values * weights, axis=1, keepdims=True)
    return {"feature": feat, "depth": depth}


if __name__ == "__main__":
    # TODO(synk): `sampler` / `implicit_fn` are external callables passed into
    # forward(); here we synthesize their outputs (sample_lengths -> depth_values,
    # density, feature) deterministically and render from those.
    key = jax.random.PRNGKey(0)
    k1, k2, k3 = jax.random.split(key, 3)

    N, P, CHUNK = 1024, 64, 2048   # rays, samples-per-ray (n_pts), chunk_size

    base = jnp.linspace(0.1, 4.0, P, dtype=jnp.float32)
    depth_values = base[None, :] + jnp.cumsum(
        0.01 * jax.random.uniform(k1, (N, P), dtype=jnp.float32), axis=-1)
    density = 2.0 * jax.random.uniform(k2, (N, P), dtype=jnp.float32)
    # implicit_fn output synthesized directly in channel-first layout (3, N, P)
    feature_cf = jax.random.uniform(k3, (3, N, P), dtype=jnp.float32)

    out = volume_render(depth_values, density, feature_cf, chunk_size=CHUNK)
    jax.block_until_ready(out)

    ref = volume_render_ref(depth_values, density, feature_cf)
    assert out["feature"].shape == (N, 3) and out["depth"].shape == (N, 1)
    assert jnp.allclose(out["feature"], ref["feature"], rtol=1e-4, atol=1e-5)
    assert jnp.allclose(out["depth"], ref["depth"], rtol=1e-4, atol=1e-5)

    print("KERNEL_OK")
</pallas_src>

<mosaic_0001>
module attributes {stable_mosaic.version = 11 : i64} {
  func.func @_volume_render_kernel(%arg0: i32, %arg1: memref<256x128xf32, #tpu.memory_space<vmem>>, %arg2: memref<256x128xf32, #tpu.memory_space<vmem>>, %arg3: memref<3x256x128xf32, #tpu.memory_space<vmem>>, %arg4: memref<128x128xf32, #tpu.memory_space<vmem>>, %arg5: memref<512x8xf32, #tpu.memory_space<vmem>>, %arg6: memref<256x8xf32, #tpu.memory_space<vmem>>) attributes {dimension_semantics = [#tpu.dimension_semantics<parallel>], iteration_bounds = array<i64: 2>, scalar_prefetch = 0 : i64, scratch_operands = 0 : i64, tpu.core_type = #tpu.core_type<tc>, window_params = [{transform_indices = @transform_0, window_bounds = array<i64: 256, 128>}, {transform_indices = @transform_1, window_bounds = array<i64: 256, 128>}, {transform_indices = @transform_2, window_bounds = array<i64: 3, 256, 128>}, {pipeline_mode = #tpu.pipeline_mode<synchronous>, transform_indices = @transform_3, window_bounds = array<i64: 128, 128>}, {pipeline_mode = #tpu.pipeline_mode<synchronous>, transform_indices = @transform_4, window_bounds = array<i64: 512, 8>}, {transform_indices = @transform_5, window_bounds = array<i64: 256, 8>}]} {
    %c0 = arith.constant 0 : index
    %c0_0 = arith.constant 0 : index
    %0 = vector.load %arg1[%c0, %c0_0] : memref<256x128xf32, #tpu.memory_space<vmem>>, vector<256x128xf32>
    %c0_1 = arith.constant 0 : index
    %c0_2 = arith.constant 0 : index
    %1 = vector.load %arg2[%c0_1, %c0_2] : memref<256x128xf32, #tpu.memory_space<vmem>>, vector<256x128xf32>
    %2 = tpu.iota {dimensions = array<i32: 1>} : vector<256x128xi32>
    %c127_i32 = arith.constant 127 : i32
    %3 = tpu.dynamic_rotate %0 by %c127_i32 dim 1 : vector<256x128xf32>, i32 -> vector<256x128xf32>
    %c64_i32 = arith.constant 64 : i32
    %c0_i32 = arith.constant 0 : i32
    %4 = arith.cmpi eq, %c64_i32, %c0_i32 : i32
    %c1_i32 = arith.constant 1 : i32
    %5 = arith.select %4, %c1_i32, %c64_i32 : i32
    %6 = vector.broadcast %5 : i32 to vector<256x128xi32>
    %7 = arith.remsi %2, %6 : vector<256x128xi32>
    %c0_i32_3 = arith.constant 0 : i32
    %8 = vector.broadcast %c0_i32_3 : i32 to vector<256x128xi32>
    %9 = arith.cmpi ne, %7, %8 : vector<256x128xi32>
    %c0_i32_4 = arith.constant 0 : i32
    %10 = vector.broadcast %c0_i32_4 : i32 to vector<256x128xi32>
    %11 = arith.cmpi slt, %7, %10 : vector<256x128xi32>
    %c0_i32_5 = arith.constant 0 : i32
    %12 = arith.cmpi slt, %5, %c0_i32_5 : i32
    %13 = vector.broadcast %12 : i1 to vector<256x128xi1>
    %14 = vector.broadcast %13 : vector<256x128xi1> to vector<256x128xi1>
    %15 = arith.xori %11, %14 : vector<256x128xi1>
    %16 = arith.andi %15, %9 : vector<256x128xi1>
    %17 = vector.broadcast %5 : i32 to vector<256x128xi32>
    %18 = arith.addi %7, %17 : vector<256x128xi32>
    %19 = arith.select %16, %18, %7 : vector<256x128xi1>, vector<256x128xi32>
    %c63_i32 = arith.constant 63 : i32
    %20 = vector.broadcast %c63_i32 : i32 to vector<256x128xi32>
    %21 = arith.cmpi eq, %19, %20 : vector<256x128xi32>
    %22 = arith.subf %3, %0 : vector<256x128xf32>
    %cst = arith.constant 1.000000e+10 : f32
    %23 = vector.broadcast %cst : f32 to vector<256x128xf32>
    %24 = arith.select %21, %23, %22 : vector<256x128xi1>, vector<256x128xf32>
    %25 = arith.mulf %1, %24 : vector<256x128xf32>
    %c0_6 = arith.constant 0 : index
    %c0_7 = arith.constant 0 : index
    %26 = vector.load %arg4[%c0_6, %c0_7] : memref<128x128xf32, #tpu.memory_space<vmem>>, vector<128x128xf32>
    %cst_8 = arith.constant dense<0.000000e+00> : vector<256x128xf32>
    %27 = tpu.matmul %25, %26, %cst_8 {dimension_numbers = #tpu.dot_dimension_numbers<[1], [0], [0], [1], [0, 0, 1, 1], [], []>} : vector<256x128xf32>, vector<128x128xf32>, vector<256x128xf32> -> vector<256x128xf32>
    %cst_9 = arith.constant 0.000000e+00 : f32
    %28 = vector.broadcast %cst_9 : f32 to vector<256x128xf32>
    %29 = arith.subf %28, %27 : vector<256x128xf32>
    %30 = math.exp %29 : vector<256x128xf32>
    %31 = arith.addf %27, %25 : vector<256x128xf32>
    %cst_10 = arith.constant 0.000000e+00 : f32
    %32 = vector.broadcast %cst_10 : f32 to vector<256x128xf32>
    %33 = arith.subf %32, %31 : vector<256x128xf32>
    %34 = math.exp %33 : vector<256x128xf32>
    %35 = arith.subf %30, %34 : vector<256x128xf32>
    %c0_11 = arith.constant 0 : index
    %c0_12 = arith.constant 0 : index
    %c0_13 = arith.constant 0 : index
    %36 = vector.load %arg3[%c0_11, %c0_12, %c0_13] : memref<3x256x128xf32, #tpu.memory_space<vmem>>, vector<1x256x128xf32>
    %37 = vector.shape_cast %36 : vector<1x256x128xf32> to vector<256x128xf32>
    %38 = arith.mulf %37, %35 : vector<256x128xf32>
    %c1 = arith.constant 1 : index
    %c0_14 = arith.constant 0 : index
    %c0_15 = arith.constant 0 : index
    %39 = vector.load %arg3[%c1, %c0_14, %c0_15] : memref<3x256x128xf32, #tpu.memory_space<vmem>>, vector<1x256x128xf32>
    %40 = vector.shape_cast %39 : vector<1x256x128xf32> to vector<256x128xf32>
    %41 = arith.mulf %40, %35 : vector<256x128xf32>
    %c2 = arith.constant 2 : index
    %c0_16 = arith.constant 0 : index
    %c0_17 = arith.constant 0 : index
    %42 = vector.load %arg3[%c2, %c0_16, %c0_17] : memref<3x256x128xf32, #tpu.memory_space<vmem>>, vector<1x256x128xf32>
    %43 = vector.shape_cast %42 : vector<1x256x128xf32> to vector<256x128xf32>
    %44 = arith.mulf %43, %35 : vector<256x128xf32>
    %45 = arith.mulf %0, %35 : vector<256x128xf32>
    %46 = tpu.concatenate %38, %41, %44, %45 in 1 : vector<256x128xf32>, vector<256x128xf32>, vector<256x128xf32>, vector<256x128xf32> -> vector<256x512xf32>
    %c0_18 = arith.constant 0 : index
    %c0_19 = arith.constant 0 : index
    %47 = vector.load %arg5[%c0_18, %c0_19] : memref<512x8xf32, #tpu.memory_space<vmem>>, vector<512x8xf32>
    %cst_20 = arith.constant dense<0.000000e+00> : vector<256x8xf32>
    %48 = tpu.matmul %46, %47, %cst_20 {dimension_numbers = #tpu.dot_dimension_numbers<[1], [0], [0], [1], [0, 0, 1, 1], [], []>} : vector<256x512xf32>, vector<512x8xf32>, vector<256x8xf32> -> vector<256x8xf32>
    %c0_21 = arith.constant 0 : index
    %c0_22 = arith.constant 0 : index
    %49 = vector.load %arg6[%c0_21, %c0_22] : memref<256x8xf32, #tpu.memory_space<vmem>>, vector<256x8xf32>
    tpu.vector_store %arg6[%c0_21, %c0_22], %48 {strides = array<i32>} : memref<256x8xf32, #tpu.memory_space<vmem>>, vector<256x8xf32>,
    return
  }
  func.func @transform_0(%arg0: i32) -> (i32, i32) {
    %c0_i32 = arith.constant 0 : i32
    %c0_i32_0 = arith.constant 0 : i32
    return %arg0, %c0_i32 : i32, i32
  }
  func.func @transform_1(%arg0: i32) -> (i32, i32) {
    %c0_i32 = arith.constant 0 : i32
    %c0_i32_0 = arith.constant 0 : i32
    return %arg0, %c0_i32 : i32, i32
  }
  func.func @transform_2(%arg0: i32) -> (i32, i32, i32) {
    %c0_i32 = arith.constant 0 : i32
    %c0_i32_0 = arith.constant 0 : i32
    %c0_i32_1 = arith.constant 0 : i32
    return %c0_i32, %arg0, %c0_i32_0 : i32, i32, i32
  }
  func.func @transform_3(%arg0: i32) -> (i32, i32) {
    %c0_i32 = arith.constant 0 : i32
    %c0_i32_0 = arith.constant 0 : i32
    %c0_i32_1 = arith.constant 0 : i32
    return %c0_i32, %c0_i32_0 : i32, i32
  }
  func.func @transform_4(%arg0: i32) -> (i32, i32) {
    %c0_i32 = arith.constant 0 : i32
    %c0_i32_0 = arith.constant 0 : i32
    %c0_i32_1 = arith.constant 0 : i32
    return %c0_i32, %c0_i32_0 : i32, i32
  }
  func.func @transform_5(%arg0: i32) -> (i32, i32) {
    %c0_i32 = arith.constant 0 : i32
    %c0_i32_0 = arith.constant 0 : i32
    return %arg0, %c0_i32 : i32, i32
  }
}

</mosaic_0001>

<llo_original>
// kernel: tpu_custom_call.1
$region0: #{tpu_custom_call.1}
  #allocation0 [shape = 'u32[]', space=smem, size = 0x4, offset = 0x4, fixed_abs, tag = 'smem constant byte address 0x4 - core index']
  #allocation1 [shape = 'u32[144,128]{1,0:T(1,128)}', space=vmem, size = 0x12000, scoped, tag = 'internal scratch']
  #allocation7 [shape = 's32[]', space=sflag, size = 0x4, offset = 0, fixed_abs, tag = 'sflag constant byte address 0x0 - dummy sync flag']
  %s0 = inlined_call_operand.vmem [shape: f32[512,128], index: 0, kind: input, shape index: {}]
  %s1 = inlined_call_operand.hbm [shape: f32[512,128], index: 1, kind: input, shape index: {}]
  %s2 = inlined_call_operand.hbm [shape: f32[3,512,128], index: 2, kind: input, shape index: {}]
  %s3 = inlined_call_operand.hbm [shape: f32[128,128], index: 3, kind: input, shape index: {}]
  %s4 = inlined_call_operand.vmem [shape: f32[512,8], index: 4, kind: input, shape index: {}]
  %s5 = inlined_call_operand.vmem [shape: f32[512,8], index: 5, kind: output, shape index: {}]
  %s6 = sld [smem:[#allocation0]]
  $region65: #{tpu_custom_call.1} parent=0
    _
  %s8 = ssub.s32 1, %s6
  %s9 = scalar_select 0, %s8, %s6
  $region1: #{tpu_custom_call.1} parent=0
    #allocation2 [shape = 'u8[262144]{0}', space=vmem, size = 0x40000, scoped, tag = 'input window, operand 1']
    #allocation3 [shape = 's32[2]{0}', space=sflag, size = 0x8, scoped, tag = 'scoped memory for tpu_custom_call.1']
    #allocation4 [shape = 'u8[786432]{0}', space=vmem, size = 0xc0000, scoped, tag = 'input window, operand 2']
    #allocation5 [shape = 's32[2]{0}', space=sflag, size = 0x8, scoped, tag = 'scoped memory for tpu_custom_call.1']
    #allocation6 [shape = 'u8[65536]{0}', space=vmem, size = 0x10000, scoped, tag = 'input window, operand 3, single buffered']
    %10 = vsyncpa [#allocation3], 0
    %s11 = scalar_lea.sflag [#allocation3], 1
    %12 = vsyncpa %s11, 0
    %13 = vsyncpa [#allocation5], 0
    %s14 = scalar_lea.sflag [#allocation5], 1
    %15 = vsyncpa %s14, 0
    loop: start=0, step=1, limit=4
    $region2: #{tpu_custom_call.1} parent=1 // loop_pre_header
      _
    $region3: #{tpu_custom_call.1} parent=1 // loop_header
      %s17 = sphi 0, %s21
      %p18 = scmp.ge.s32.totalorder %s17, 4
      %s27 = sphi 0, %s29
      %s30 = sphi 0, %s27
      %s31 = sphi 0, %s30
      %s47 = sphi 0, %s31
      %s53 = sphi 0, %s55
      %s56 = sphi 0, %s53
      %s57 = sphi 0, %s56
      %s73 = sphi 0, %s57
      %s79 = sphi 0, %s81
      %s82 = sphi 0, %s79
      %s83 = sphi 0, %s82
      %s99 = sphi 0, %s83
      %s103 = sphi 0, %s103
      %s105 = sphi 0, %s103
      %s106 = sphi 0, %s105
      %s120 = sphi 0, %s106
      %s124 = sphi 0, %s124
      %s126 = sphi 0, %s124
      %s127 = sphi 0, %s126
      %s141 = sphi 0, %s127
      %s147 = sphi 0, %s149
      %s150 = sphi 0, %s147
      %s151 = sphi 0, %s150
      %s167 = sphi 0, %s151
    $region4: #{tpu_custom_call.1} parent=1 // loop_header_branch
      %20 = sbr.rel (%p18) target = $region8
    $region5: #{tpu_custom_call.1} parent=1 // loop_body
      %s22 = ssub.s32 %s17, 1
      %s23 = ssub.s32 %s17, 2
      %s24 = sadd.s32 %s17, 1
      %s25 = ssub.s32 %s17, %s24
      %p26 = scmp.eq.s32.totalorder %s25, 0
      %s28 = sadd.s32 %s27, 1
      %s29 = scalar_select %p26, %s27, %s28
      %p32 = pneg %p26
      %p33 = scmp.eq.s32.totalorder %s17, 1
      %p34 = por %p32, %p33
      %p35 = scmp.ne.s32.totalorder %s27, %s30
      %p36 = scmp.eq.s32.totalorder %s17, 0
      %p37 = por %p35, %p36
      %p38 = scmp.ne.s32.totalorder %s27, %s30
      %p39 = scmp.eq.s32.totalorder %s22, 1
      %p40 = por %p38, %p39
      %p41 = scmp.ne.s32.totalorder %s30, %s31
      %p42 = scmp.eq.s32.totalorder %s22, 0
      %p43 = por %p41, %p42
      %p44 = scmp.ne.s32.totalorder %s30, %s31
      %p45 = scmp.eq.s32.totalorder %s23, 1
      %p46 = por %p44, %p45
      %p48 = scmp.ne.s32.totalorder %s31, %s47
      %p49 = scmp.eq.s32.totalorder %s23, 0
      %p50 = por %p48, %p49
      %s51 = ssub.s32 %s17, %s24
      %p52 = scmp.eq.s32.totalorder %s51, 0
      %s54 = sadd.s32 %s53, 1
      %s55 = scalar_select %p52, %s53, %s54
      %p58 = pneg %p52
      %p59 = scmp.eq.s32.totalorder %s17, 1
      %p60 = por %p58, %p59
      %p61 = scmp.ne.s32.totalorder %s53, %s56
      %p62 = scmp.eq.s32.totalorder %s17, 0
      %p63 = por %p61, %p62
      %p64 = scmp.ne.s32.totalorder %s53, %s56
      %p65 = scmp.eq.s32.totalorder %s22, 1
      %p66 = por %p64, %p65
      %p67 = scmp.ne.s32.totalorder %s56, %s57
      %p68 = scmp.eq.s32.totalorder %s22, 0
      %p69 = por %p67, %p68
      %p70 = scmp.ne.s32.totalorder %s56, %s57
      %p71 = scmp.eq.s32.totalorder %s23, 1
      %p72 = por %p70, %p71
      %p74 = scmp.ne.s32.totalorder %s57, %s73
      %p75 = scmp.eq.s32.totalorder %s23, 0
      %p76 = por %p74, %p75
      %s77 = ssub.s32 %s17, %s24
      %p78 = scmp.eq.s32.totalorder %s77, 0
      %s80 = sadd.s32 %s79, 1
      %s81 = scalar_select %p78, %s79, %s80
      %p84 = pneg %p78
      %p85 = scmp.eq.s32.totalorder %s17, 1
      %p86 = por %p84, %p85
      %p87 = scmp.ne.s32.totalorder %s79, %s82
      %p88 = scmp.eq.s32.totalorder %s17, 0
      %p89 = por %p87, %p88
      %p90 = scmp.ne.s32.totalorder %s79, %s82
      %p91 = scmp.eq.s32.totalorder %s22, 1
      %p92 = por %p90, %p91
      %p93 = scmp.ne.s32.totalorder %s82, %s83
      %p94 = scmp.eq.s32.totalorder %s22, 0
      %p95 = por %p93, %p94
      %p96 = scmp.ne.s32.totalorder %s82, %s83
      %p97 = scmp.eq.s32.totalorder %s23, 1
      %p98 = por %p96, %p97
      %p100 = scmp.ne.s32.totalorder %s83, %s99
      %p101 = scmp.eq.s32.totalorder %s23, 0
      %p102 = por %p100, %p101
      %s104 = sadd.s32 %s103, 1
      %p107 = scmp.eq.s32.totalorder %s17, 1
      %p108 = scmp.ne.s32.totalorder %s103, %s105
      %p109 = scmp.eq.s32.totalorder %s17, 0
      %p110 = por %p108, %p109
      %p111 = scmp.ne.s32.totalorder %s103, %s105
      %p112 = scmp.eq.s32.totalorder %s22, 1
      %p113 = por %p111, %p112
      %p114 = scmp.ne.s32.totalorder %s105, %s106
      %p115 = scmp.eq.s32.totalorder %s22, 0
      %p116 = por %p114, %p115
      %p117 = scmp.ne.s32.totalorder %s105, %s106
      %p118 = scmp.eq.s32.totalorder %s23, 1
      %p119 = por %p117, %p118
      %p121 = scmp.ne.s32.totalorder %s106, %s120
      %p122 = scmp.eq.s32.totalorder %s23, 0
      %p123 = por %p121, %p122
      %s125 = sadd.s32 %s124, 1
      %p128 = scmp.eq.s32.totalorder %s17, 1
      %p129 = scmp.ne.s32.totalorder %s124, %s126
      %p130 = scmp.eq.s32.totalorder %s17, 0
      %p131 = por %p129, %p130
      %p132 = scmp.ne.s32.totalorder %s124, %s126
      %p133 = scmp.eq.s32.totalorder %s22, 1
      %p134 = por %p132, %p133
      %p135 = scmp.ne.s32.totalorder %s126, %s127
      %p136 = scmp.eq.s32.totalorder %s22, 0
      %p137 = por %p135, %p136
      %p138 = scmp.ne.s32.totalorder %s126, %s127
      %p139 = scmp.eq.s32.totalorder %s23, 1
      %p140 = por %p138, %p139
      %p142 = scmp.ne.s32.totalorder %s127, %s141
      %p143 = scmp.eq.s32.totalorder %s23, 0
      %p144 = por %p142, %p143
      %s145 = ssub.s32 %s17, %s24
      %p146 = scmp.eq.s32.totalorder %s145, 0
      %s148 = sadd.s32 %s147, 1
      %s149 = scalar_select %p146, %s147, %s148
      %p152 = pneg %p146
      %p153 = scmp.eq.s32.totalorder %s17, 1
      %p154 = por %p152, %p153
      %p155 = scmp.ne.s32.totalorder %s147, %s150
      %p156 = scmp.eq.s32.totalorder %s17, 0
      %p157 = por %p155, %p156
      %p158 = scmp.ne.s32.totalorder %s147, %s150
      %p159 = scmp.eq.s32.totalorder %s22, 1
      %p160 = por %p158, %p159
      %p161 = scmp.ne.s32.totalorder %s150, %s151
      %p162 = scmp.eq.s32.totalorder %s22, 0
      %p163 = por %p161, %p162
      %p164 = scmp.ne.s32.totalorder %s150, %s151
      %p165 = scmp.eq.s32.totalorder %s23, 1
      %p166 = por %p164, %p165
      %p168 = scmp.ne.s32.totalorder %s151, %s167
      %p169 = scmp.eq.s32.totalorder %s23, 0
      %p170 = por %p168, %p169
      %p171 = scmp.le.s32.totalorder 1, %s17
      %p172 = scmp.lt.s32.totalorder %s17, 3
      %p173 = pnand %p171, %p172
      %p174 = pneg %p173
      // Predicated region
      $region9: #{tpu_custom_call.1} parent=5 // pred_check
        _
      $region10: #{tpu_custom_call.1} parent=5 // pred_check_branch
        %176 = sbr.rel (%p173) target = $region12
      $region11: #{tpu_custom_call.1} parent=5 // pred_region
        %s177 = ssub.s32 %s17, 1
        // Predicated region
        $region13: #{tpu_custom_call.1} parent=11 // pred_check
          %p178 = pneg %p116
        $region14: #{tpu_custom_call.1} parent=11 // pred_check_branch
          %180 = sbr.rel (%p178) target = $region16
        $region15: #{tpu_custom_call.1} parent=11 // pred_region
          %s182 = ssub.s32 2048, 2048
          %183 = vsyncadd [#allocation5], %s182
          %s184 = sshll.u32 [#allocation6], 4
          %s185 = int_to_ptr.vmem [resolvable:$true] %s184
          %190 = dma.hbm_to_vmem [thread:$0]  %s3, 2048, %s185, [#allocation5], 128, 128, 8
        $region16: #{tpu_custom_call.1} parent=11 // pred_fallthru
          _
        // Predicated region
        $region17: #{tpu_custom_call.1} parent=11 // pred_check
          %p191 = pneg %p137
        $region18: #{tpu_custom_call.1} parent=11 // pred_check_branch
          %193 = sbr.rel (%p191) target = $region20
        $region19: #{tpu_custom_call.1} parent=11 // pred_region
          _
        $region20: #{tpu_custom_call.1} parent=11 // pred_fallthru
          _
      $region12: #{tpu_custom_call.1} parent=5 // pred_fallthru
        _
      %p194 = scmp.lt.s32.totalorder %s17, 2
      // Predicated region
      $region21: #{tpu_custom_call.1} parent=5 // pred_check
        %p195 = pneg %p194
      $region22: #{tpu_custom_call.1} parent=5 // pred_check_branch
        %197 = sbr.rel (%p195) target = $region24
      $region23: #{tpu_custom_call.1} parent=5 // pred_region
        // Predicated region
        $region25: #{tpu_custom_call.1} parent=23 // pred_check
          %p198 = pneg %p37
        $region26: #{tpu_custom_call.1} parent=23 // pred_check_branch
          %200 = sbr.rel (%p198) target = $region28
        $region27: #{tpu_custom_call.1} parent=23 // pred_region
          %s201 = smul.u32 32, %s17
          %p202 = scmp.lt.s32.totalorder %s201, 63
          %s203 = scalar_select %p202, %s201, 63
          %s204 = smul.addr %s203, 8
          %s205 = scalar_lea.vmem %s0, %s204
          %s206 = smul.u32 32, %s17
        $region28: #{tpu_custom_call.1} parent=23 // pred_fallthru
          _
        // Predicated region
        $region29: #{tpu_custom_call.1} parent=23 // pred_check
          %p207 = pneg %p63
        $region30: #{tpu_custom_call.1} parent=23 // pred_check_branch
          %209 = sbr.rel (%p207) target = $region32
        $region31: #{tpu_custom_call.1} parent=23 // pred_region
          %s210 = sand.u32 %s53, 1
          %s211 = scalar_lea.sflag [#allocation3], %s210
          %s212 = sand.u32 %s53, 1
          %s213 = smul.addr %s212, 256
          %s214 = scalar_lea.vmem [#allocation2], %s213
          %s215 = smul.u32 32, %s17
          %s217 = ssub.s32 4096, 4096
          %218 = vsyncadd %s211, %s217
          %s219 = smul.addr %s215, 128
          %s220 = scalar_lea.hbm %s1, %s219
          %s221 = sshll.u32 %s214, 4
          %s222 = int_to_ptr.vmem [resolvable:$true] %s221
          %227 = dma.hbm_to_vmem [thread:$0]  %s220, 4096, %s222, %s211, 128, 128, 8
        $region32: #{tpu_custom_call.1} parent=23 // pred_fallthru
          _
        // Predicated region
        $region33: #{tpu_custom_call.1} parent=23 // pred_check
          %p228 = pneg %p89
        $region34: #{tpu_custom_call.1} parent=23 // pred_check_branch
          %230 = sbr.rel (%p228) target = $region36
        $region35: #{tpu_custom_call.1} parent=23 // pred_region
          #allocation8 [shape = 'u32[6]{0}', space=smem, size = 0x18, scoped, tag = 'DMA stride descriptor']
          %s231 = sand.u32 %s17, 1
          %s232 = scalar_lea.sflag [#allocation5], %s231
          %s233 = sand.u32 %s79, 1
          %s234 = smul.addr %s233, 768
          %s235 = scalar_lea.vmem [#allocation4], %s234
          %s236 = smul.u32 32, %s17
          %s238 = ssub.s32 12288, 12288
          %239 = vsyncadd %s232, %s238
          %s240 = smul.addr %s236, 128
          %s241 = scalar_lea.hbm %s2, %s240
          %s243 = sshll.u32 1, 14
          %s244 = sxor.u32 4294967295, %s243
          %s246 = sld [smem:[#allocation0]]
          %s247 = sadd.s32 2, %s246
          %s249 = sshll.u32 7, 26
          %s250 = sxor.u32 4294967295, %s249
          %s251 = sand.u32 0, %s250
          %s252 = sshll.u32 %s247, 26
          %s253 = sor.u32 %s251, %s252
          %s254 = sshll.u32 %s235, 4
          %s255 = int_to_ptr.vmem [resolvable:$true] %s254
          %261 = sst [smem:[#allocation8]] 8192
          %s262 = scalar_lea.smem [#allocation8], 1
          %263 = sst [smem:[%s262]] 4096
          %s264 = scalar_lea.smem [#allocation8], 2
          %265 = sst [smem:[%s264]] 32
          %s266 = scalar_lea.smem [#allocation8], 3
          %267 = sst [smem:[%s266]] 128
          %s268 = scalar_lea.smem [#allocation8], 4
          %269 = sst [smem:[%s268]] 128
          %s270 = scalar_lea.smem [#allocation8], 5
          %271 = sst [smem:[%s270]] 8
          %273 = dma.general %s241, 12288, %s255, %s232, [#allocation7], [#allocation8], %s253, 0
        $region36: #{tpu_custom_call.1} parent=23 // pred_fallthru
          _
      $region24: #{tpu_custom_call.1} parent=5 // pred_fallthru
        _
      %p274 = scmp.le.s32.totalorder 1, %s17
      %p275 = scmp.lt.s32.totalorder %s17, 3
      %p276 = pnand %p274, %p275
      %p277 = pneg %p276
      // Predicated region
      $region37: #{tpu_custom_call.1} parent=5 // pred_check
        _
      $region38: #{tpu_custom_call.1} parent=5 // pred_check_branch
        %279 = sbr.rel (%p276) target = $region40
      $region39: #{tpu_custom_call.1} parent=5 // pred_region
        %s280 = ssub.s32 %s17, 1
        %s281 = sand.u32 %s56, 1
        %s282 = scalar_lea.sflag [#allocation3], %s281
        %s283 = sand.u32 %s56, 1
        %s284 = smul.addr %s283, 256
        %s285 = scalar_lea.vmem [#allocation2], %s284
        // Predicated region
        $region41: #{tpu_custom_call.1} parent=39 // pred_check
          %p286 = pneg %p69
        $region42: #{tpu_custom_call.1} parent=39 // pred_check_branch
          %288 = sbr.rel (%p286) target = $region44
        $region43: #{tpu_custom_call.1} parent=39 // pred_region
          %289 = dma.done %s282, 4096
        $region44: #{tpu_custom_call.1} parent=39 // pred_fallthru
          _
        %s290 = sand.u32 %s22, 1
        %s291 = scalar_lea.sflag [#allocation5], %s290
        %s292 = sand.u32 %s82, 1
        %s293 = smul.addr %s292, 768
        %s294 = scalar_lea.vmem [#allocation4], %s293
        // Predicated region
        $region45: #{tpu_custom_call.1} parent=39 // pred_check
          %p295 = pneg %p95
        $region46: #{tpu_custom_call.1} parent=39 // pred_check_branch
          %297 = sbr.rel (%p295) target = $region48
        $region47: #{tpu_custom_call.1} parent=39 // pred_region
          %298 = dma.done %s291, 12288
        $region48: #{tpu_custom_call.1} parent=39 // pred_fallthru
          _
        // Predicated region
        $region49: #{tpu_custom_call.1} parent=39 // pred_check
          %p299 = pneg %p116
        $region50: #{tpu_custom_call.1} parent=39 // pred_check_branch
          %301 = sbr.rel (%p299) target = $region52
        $region51: #{tpu_custom_call.1} parent=39 // pred_region
          %302 = dma.done [#allocation5], 2048
        $region52: #{tpu_custom_call.1} parent=39 // pred_fallthru
          _
        %s303 = smul.u32 32, %s22
        %p304 = scmp.lt.s32.totalorder %s303, 63
        %s305 = scalar_select %p304, %s303, 63
        %s306 = smul.addr %s305, 8
        %s307 = scalar_lea.vmem %s0, %s306
        %p308 = pneg %p43
        %p309 = pneg %p40
        %s310 = sand.u32 %s56, 1
        %s311 = scalar_lea.sflag [#allocation3], %s310
        %s312 = sand.u32 %s56, 1
        %s313 = smul.addr %s312, 256
        %s314 = scalar_lea.vmem [#allocation2], %s313
        %p315 = pneg %p69
        %p316 = pneg %p66
        %s317 = sand.u32 %s22, 1
        %s318 = scalar_lea.sflag [#allocation5], %s317
        %s319 = sand.u32 %s82, 1
        %s320 = smul.addr %s319, 768
        %s321 = scalar_lea.vmem [#allocation4], %s320
        %p322 = pneg %p95
        %p323 = pneg %p92
        %p324 = pneg %p116
        %p325 = pneg %p113
        %p326 = pneg %p137
        %p327 = pneg %p134
        %p328 = pneg %p163
        %p329 = pneg %p160
        %s330 = smul.u32 32, %s22
        %p331 = scmp.lt.s32.totalorder %s330, 63
        %s332 = scalar_select %p331, %s330, 63
        %s333 = smul.addr %s332, 8
        %s334 = scalar_lea.vmem %s5, %s333
        %s335 = smul.u32 32, %s22
        %p336 = scmp.lt.s32.totalorder %s335, 63
        %s337 = scalar_select %p336, %s335, 63
        %s338 = smul.addr %s337, 8
        %s339 = scalar_lea.vmem %s0, %s338
        %s340 = smul.u32 32, %s22
        %s341 = smul.u32 32, %s22
        %s342 = smul.u32 32, %s22
        %s343 = smul.u32 32, %s22
        %p344 = scmp.lt.s32.totalorder %s343, 63
        %s345 = scalar_select %p344, %s343, 63
        %s346 = smul.addr %s345, 8
        %s347 = scalar_lea.vmem %s5, %s346
        %s348 = smul.u32 32, %s22
        %v349 = vld [vmem:[%s339] sm:$0xff]
        %v350 = vld [vmem:[%s339 + $0x8] sm:$0xff]
        %v351 = vld [vmem:[%s339 + $0x10] sm:$0xff]
        %v352 = vld [vmem:[%s339 + $0x18] sm:$0xff]
        %v353 = vld [vmem:[%s339 + $0x20] sm:$0xff]
        %v354 = vld [vmem:[%s339 + $0x28] sm:$0xff]
        %v355 = vld [vmem:[%s339 + $0x30] sm:$0xff]
        %v356 = vld [vmem:[%s339 + $0x38] sm:$0xff]
        %v357 = vld [vmem:[%s339 + $0x40] sm:$0xff]
        %v358 = vld [vmem:[%s339 + $0x48] sm:$0xff]
        %v359 = vld [vmem:[%s339 + $0x50] sm:$0xff]
        %v360 = vld [vmem:[%s339 + $0x58] sm:$0xff]
        %v361 = vld [vmem:[%s339 + $0x60] sm:$0xff]
        %v362 = vld [vmem:[%s339 + $0x68] sm:$0xff]
        %v363 = vld [vmem:[%s339 + $0x70] sm:$0xff]
        %v364 = vld [vmem:[%s339 + $0x78] sm:$0xff]
        %v365 = vld [vmem:[%s339 + $0x80] sm:$0xff]
        %v366 = vld [vmem:[%s339 + $0x88] sm:$0xff]
        %v367 = vld [vmem:[%s339 + $0x90] sm:$0xff]
        %v368 = vld [vmem:[%s339 + $0x98] sm:$0xff]
        %v369 = vld [vmem:[%s339 + $0xa0] sm:$0xff]
        %v370 = vld [vmem:[%s339 + $0xa8] sm:$0xff]
        %v371 = vld [vmem:[%s339 + $0xb0] sm:$0xff]
        %v372 = vld [vmem:[%s339 + $0xb8] sm:$0xff]
        %v373 = vld [vmem:[%s339 + $0xc0] sm:$0xff]
        %v374 = vld [vmem:[%s339 + $0xc8] sm:$0xff]
        %v375 = vld [vmem:[%s339 + $0xd0] sm:$0xff]
        %v376 = vld [vmem:[%s339 + $0xd8] sm:$0xff]
        %v377 = vld [vmem:[%s339 + $0xe0] sm:$0xff]
        %v378 = vld [vmem:[%s339 + $0xe8] sm:$0xff]
        %v379 = vld [vmem:[%s339 + $0xf0] sm:$0xff]
        %v380 = vld [vmem:[%s339 + $0xf8] sm:$0xff]
        %v381 = vld [vmem:[%s285] sm:$0xff]
        %v382 = vld [vmem:[%s285 + $0x8] sm:$0xff]
        %v383 = vld [vmem:[%s285 + $0x10] sm:$0xff]
        %v384 = vld [vmem:[%s285 + $0x18] sm:$0xff]
        %v385 = vld [vmem:[%s285 + $0x20] sm:$0xff]
        %v386 = vld [vmem:[%s285 + $0x28] sm:$0xff]
        %v387 = vld [vmem:[%s285 + $0x30] sm:$0xff]
        %v388 = vld [vmem:[%s285 + $0x38] sm:$0xff]
        %v389 = vld [vmem:[%s285 + $0x40] sm:$0xff]
        %v390 = vld [vmem:[%s285 + $0x48] sm:$0xff]
        %v391 = vld [vmem:[%s285 + $0x50] sm:$0xff]
        %v392 = vld [vmem:[%s285 + $0x58] sm:$0xff]
        %v393 = vld [vmem:[%s285 + $0x60] sm:$0xff]
        %v394 = vld [vmem:[%s285 + $0x68] sm:$0xff]
        %v395 = vld [vmem:[%s285 + $0x70] sm:$0xff]
        %v396 = vld [vmem:[%s285 + $0x78] sm:$0xff]
        %v397 = vld [vmem:[%s285 + $0x80] sm:$0xff]
        %v398 = vld [vmem:[%s285 + $0x88] sm:$0xff]
        %v399 = vld [vmem:[%s285 + $0x90] sm:$0xff]
        %v400 = vld [vmem:[%s285 + $0x98] sm:$0xff]
        %v401 = vld [vmem:[%s285 + $0xa0] sm:$0xff]
        %v402 = vld [vmem:[%s285 + $0xa8] sm:$0xff]
        %v403 = vld [vmem:[%s285 + $0xb0] sm:$0xff]
        %v404 = vld [vmem:[%s285 + $0xb8] sm:$0xff]
        %v405 = vld [vmem:[%s285 + $0xc0] sm:$0xff]
        %v406 = vld [vmem:[%s285 + $0xc8] sm:$0xff]
        %v407 = vld [vmem:[%s285 + $0xd0] sm:$0xff]
        %v408 = vld [vmem:[%s285 + $0xd8] sm:$0xff]
        %v409 = vld [vmem:[%s285 + $0xe0] sm:$0xff]
        %v410 = vld [vmem:[%s285 + $0xe8] sm:$0xff]
        %v411 = vld [vmem:[%s285 + $0xf0] sm:$0xff]
        %v412 = vld [vmem:[%s285 + $0xf8] sm:$0xff]
        %v413 = vlaneseq
        %v414 = vand.u32 %v413, 127
        %415 = vrot.lane.b32.xlu0 %v349, 127
        %v416 = vpop.permute.xlu0 %415
        %417 = vrot.lane.b32.xlu0 %v350, 127
        %v418 = vpop.permute.xlu0 %417
        %419 = vrot.lane.b32.xlu0 %v351, 127
        %v420 = vpop.permute.xlu0 %419
        %421 = vrot.lane.b32.xlu0 %v352, 127
        %v422 = vpop.permute.xlu0 %421
        %423 = vrot.lane.b32.xlu0 %v353, 127
        %v424 = vpop.permute.xlu0 %423
        %425 = vrot.lane.b32.xlu0 %v354, 127
        %v426 = vpop.permute.xlu0 %425
        %427 = vrot.lane.b32.xlu0 %v355, 127
        %v428 = vpop.permute.xlu0 %427
        %429 = vrot.lane.b32.xlu0 %v356, 127
        %v430 = vpop.permute.xlu0 %429
        %431 = vrot.lane.b32.xlu0 %v357, 127
        %v432 = vpop.permute.xlu0 %431
        %433 = vrot.lane.b32.xlu0 %v358, 127
        %v434 = vpop.permute.xlu0 %433
        %435 = vrot.lane.b32.xlu0 %v359, 127
        %v436 = vpop.permute.xlu0 %435
        %437 = vrot.lane.b32.xlu0 %v360, 127
        %v438 = vpop.permute.xlu0 %437
        %439 = vrot.lane.b32.xlu0 %v361, 127
        %v440 = vpop.permute.xlu0 %439
        %441 = vrot.lane.b32.xlu0 %v362, 127
        %v442 = vpop.permute.xlu0 %441
        %443 = vrot.lane.b32.xlu0 %v363, 127
        %v444 = vpop.permute.xlu0 %443
        %445 = vrot.lane.b32.xlu0 %v364, 127
        %v446 = vpop.permute.xlu0 %445
        %447 = vrot.lane.b32.xlu0 %v365, 127
        %v448 = vpop.permute.xlu0 %447
        %449 = vrot.lane.b32.xlu0 %v366, 127
        %v450 = vpop.permute.xlu0 %449
        %451 = vrot.lane.b32.xlu0 %v367, 127
        %v452 = vpop.permute.xlu0 %451
        %453 = vrot.lane.b32.xlu0 %v368, 127
        %v454 = vpop.permute.xlu0 %453
        %455 = vrot.lane.b32.xlu0 %v369, 127
        %v456 = vpop.permute.xlu0 %455
        %457 = vrot.lane.b32.xlu0 %v370, 127
        %v458 = vpop.permute.xlu0 %457
        %459 = vrot.lane.b32.xlu0 %v371, 127
        %v460 = vpop.permute.xlu0 %459
        %461 = vrot.lane.b32.xlu0 %v372, 127
        %v462 = vpop.permute.xlu0 %461
        %463 = vrot.lane.b32.xlu0 %v373, 127
        %v464 = vpop.permute.xlu0 %463
        %465 = vrot.lane.b32.xlu0 %v374, 127
        %v466 = vpop.permute.xlu0 %465
        %467 = vrot.lane.b32.xlu0 %v375, 127
        %v468 = vpop.permute.xlu0 %467
        %469 = vrot.lane.b32.xlu0 %v376, 127
        %v470 = vpop.permute.xlu0 %469
        %471 = vrot.lane.b32.xlu0 %v377, 127
        %v472 = vpop.permute.xlu0 %471
        %473 = vrot.lane.b32.xlu0 %v378, 127
        %v474 = vpop.permute.xlu0 %473
        %475 = vrot.lane.b32.xlu0 %v379, 127
        %v476 = vpop.permute.xlu0 %475
        %477 = vrot.lane.b32.xlu0 %v380, 127
        %v478 = vpop.permute.xlu0 %477
        %vm479 = vcmp.lt.s32.totalorder %v414, 0
        %v480 = vsub.s32 0, %v414
        %v481 = vsel %vm479, %v480, %v414
        %v482 = vshrl.u32 %v481, 6
        %v483 = vand.u32 %v481, 63
        %v484 = vsub.s32 0, %v483
        %v485 = vsel %vm479, %v484, %v483
        %vm486 = vcmp.ne.s32.totalorder %v485, 0
        %vm487 = vcmp.lt.s32.totalorder %v485, 0
        %vm488 = vmand %vm487, %vm486
        %v489 = vadd.s32 %v485, 64
        %v490 = vsel %vm488, %v489, %v485
        %vm491 = vcmp.eq.s32.totalorder %v490, 63
        %v492 = vsub.f32 %v416, %v349
        %v493 = vsub.f32 %v418, %v350
        %v494 = vsub.f32 %v420, %v351
        %v495 = vsub.f32 %v422, %v352
        %v496 = vsub.f32 %v424, %v353
        %v497 = vsub.f32 %v426, %v354
        %v498 = vsub.f32 %v428, %v355
        %v499 = vsub.f32 %v430, %v356
        %v500 = vsub.f32 %v432, %v357
        %v501 = vsub.f32 %v434, %v358
        %v502 = vsub.f32 %v436, %v359
        %v503 = vsub.f32 %v438, %v360
        %v504 = vsub.f32 %v440, %v361
        %v505 = vsub.f32 %v442, %v362
        %v506 = vsub.f32 %v444, %v363
        %v507 = vsub.f32 %v446, %v364
        %v508 = vsub.f32 %v448, %v365
        %v509 = vsub.f32 %v450, %v366
        %v510 = vsub.f32 %v452, %v367
        %v511 = vsub.f32 %v454, %v368
        %v512 = vsub.f32 %v456, %v369
        %v513 = vsub.f32 %v458, %v370
        %v514 = vsub.f32 %v460, %v371
        %v515 = vsub.f32 %v462, %v372
        %v516 = vsub.f32 %v464, %v373
        %v517 = vsub.f32 %v466, %v374
        %v518 = vsub.f32 %v468, %v375
        %v519 = vsub.f32 %v470, %v376
        %v520 = vsub.f32 %v472, %v377
        %v521 = vsub.f32 %v474, %v378
        %v522 = vsub.f32 %v476, %v379
        %v523 = vsub.f32 %v478, %v380
        %v524 = vsel %vm491, 1e+10, %v492
        %v525 = vsel %vm491, 1e+10, %v493
        %v526 = vsel %vm491, 1e+10, %v494
        %v527 = vsel %vm491, 1e+10, %v495
        %v528 = vsel %vm491, 1e+10, %v496
        %v529 = vsel %vm491, 1e+10, %v497
        %v530 = vsel %vm491, 1e+10, %v498
        %v531 = vsel %vm491, 1e+10, %v499
        %v532 = vsel %vm491, 1e+10, %v500
        %v533 = vsel %vm491, 1e+10, %v501
        %v534 = vsel %vm491, 1e+10, %v502
        %v535 = vsel %vm491, 1e+10, %v503
        %v536 = vsel %vm491, 1e+10, %v504
        %v537 = vsel %vm491, 1e+10, %v505
        %v538 = vsel %vm491, 1e+10, %v506
        %v539 = vsel %vm491, 1e+10, %v507
        %v540 = vsel %vm491, 1e+10, %v508
        %v541 = vsel %vm491, 1e+10, %v509
        %v542 = vsel %vm491, 1e+10, %v510
        %v543 = vsel %vm491, 1e+10, %v511
        %v544 = vsel %vm491, 1e+10, %v512
        %v545 = vsel %vm491, 1e+10, %v513
        %v546 = vsel %vm491, 1e+10, %v514
        %v547 = vsel %vm491, 1e+10, %v515
        %v548 = vsel %vm491, 1e+10, %v516
        %v549 = vsel %vm491, 1e+10, %v517
        %v550 = vsel %vm491, 1e+10, %v518
        %v551 = vsel %vm491, 1e+10, %v519
        %v552 = vsel %vm491, 1e+10, %v520
        %v553 = vsel %vm491, 1e+10, %v521
        %v554 = vsel %vm491, 1e+10, %v522
        %v555 = vsel %vm491, 1e+10, %v523
        %v556 = vmul.f32 %v381, %v524
        %v557 = vmul.f32 %v382, %v525
        %v558 = vmul.f32 %v383, %v526
        %v559 = vmul.f32 %v384, %v527
        %v560 = vmul.f32 %v385, %v528
        %v561 = vmul.f32 %v386, %v529
        %v562 = vmul.f32 %v387, %v530
        %v563 = vmul.f32 %v388, %v531
        %v564 = vmul.f32 %v389, %v532
        %v565 = vmul.f32 %v390, %v533
        %v566 = vmul.f32 %v391, %v534
        %v567 = vmul.f32 %v392, %v535
        %v568 = vmul.f32 %v393, %v536
        %v569 = vmul.f32 %v394, %v537
        %v570 = vmul.f32 %v395, %v538
        %v571 = vmul.f32 %v396, %v539
        %v572 = vmul.f32 %v397, %v540
        %v573 = vmul.f32 %v398, %v541
        %v574 = vmul.f32 %v399, %v542
        %v575 = vmul.f32 %v400, %v543
        %v576 = vmul.f32 %v401, %v544
        %v577 = vmul.f32 %v402, %v545
        %v578 = vmul.f32 %v403, %v546
        %v579 = vmul.f32 %v404, %v547
        %v580 = vmul.f32 %v405, %v548
        %v581 = vmul.f32 %v406, %v549
        %v582 = vmul.f32 %v407, %v550
        %v583 = vmul.f32 %v408, %v551
        %v584 = vmul.f32 %v409, %v552
        %v585 = vmul.f32 %v410, %v553
        %v586 = vmul.f32 %v411, %v554
        %v587 = vmul.f32 %v412, %v555
        %v588 = vld [vmem:[#allocation6] sm:$0xff]
        %v589 = vld [vmem:[#allocation6 + $0x8] sm:$0xff]
        %v590 = vld [vmem:[#allocation6 + $0x10] sm:$0xff]
        %v591 = vld [vmem:[#allocation6 + $0x18] sm:$0xff]
        %v592 = vld [vmem:[#allocation6 + $0x20] sm:$0xff]
        %v593 = vld [vmem:[#allocation6 + $0x28] sm:$0xff]
        %v594 = vld [vmem:[#allocation6 + $0x30] sm:$0xff]
        %v595 = vld [vmem:[#allocation6 + $0x38] sm:$0xff]
        %v596 = vld [vmem:[#allocation6 + $0x40] sm:$0xff]
        %v597 = vld [vmem:[#allocation6 + $0x48] sm:$0xff]
        %v598 = vld [vmem:[#allocation6 + $0x50] sm:$0xff]
        %v599 = vld [vmem:[#allocation6 + $0x58] sm:$0xff]
        %v600 = vld [vmem:[#allocation6 + $0x60] sm:$0xff]
        %v601 = vld [vmem:[#allocation6 + $0x68] sm:$0xff]
        %v602 = vld [vmem:[#allocation6 + $0x70] sm:$0xff]
        %v603 = vld [vmem:[#allocation6 + $0x78] sm:$0xff]
        %604 = vmatprep.subr.mxu0 0.0
        %605 = vmatpush1.msra.mxu0 %v588
        %606 = vmatprep.subr.mxu0 0.0
        %607 = vmatpush1.msra.mxu0 %v589
        %608 = vmatprep.subr.mxu0 0.0
        %609 = vmatpush1.msra.mxu0 %v590
        %610 = vmatprep.subr.mxu0 0.0
        %611 = vmatpush1.msra.mxu0 %v591
        %612 = vmatprep.subr.mxu0 0.0
        %613 = vmatpush1.msra.mxu0 %v592
        %614 = vmatprep.subr.mxu0 0.0
        %615 = vmatpush1.msra.mxu0 %v593
        %616 = vmatprep.subr.mxu0 0.0
        %617 = vmatpush1.msra.mxu0 %v594
        %618 = vmatprep.subr.mxu0 0.0
        %619 = vmatpush1.msra.mxu0 %v595
        %620 = vmatprep.subr.mxu0 0.0
        %621 = vmatpush1.msra.mxu0 %v596
        %622 = vmatprep.subr.mxu0 0.0
        %623 = vmatpush1.msra.mxu0 %v597
        %624 = vmatprep.subr.mxu0 0.0
        %625 = vmatpush1.msra.mxu0 %v598
        %626 = vmatprep.subr.mxu0 0.0
        %627 = vmatpush1.msra.mxu0 %v599
        %628 = vmatprep.subr.mxu0 0.0
        %629 = vmatpush1.msra.mxu0 %v600
        %630 = vmatprep.subr.mxu0 0.0
        %631 = vmatpush1.msra.mxu0 %v601
        %632 = vmatprep.subr.mxu0 0.0
        %633 = vmatpush1.msra.mxu0 %v602
        %634 = vmatprep.subr.mxu0 0.0
        %635 = vmatpush1.msra.mxu0 %v603
        %636 = vmatprep.subr.mxu0 0.0
        %637 = vmatpush1.msra.mxu0 0.0
        %638 = vmatprep.subr.mxu0 0.0
        %639 = vmatpush1.msra.mxu0 0.0
        %640 = vmatprep.subr.mxu0 0.0
        %641 = vmatpush1.msra.mxu0 0.0
        %642 = vmatprep.subr.mxu0 0.0
        %643 = vmatpush1.msra.mxu0 0.0
        %644 = vmatprep.subr.mxu0 0.0
        %645 = vmatpush1.msra.mxu0 0.0
        %646 = vmatprep.subr.mxu0 0.0
        %647 = vmatpush1.msra.mxu0 0.0
        %648 = vmatprep.subr.mxu0 0.0
        %649 = vmatpush1.msra.mxu0 0.0
        %650 = vmatprep.subr.mxu0 0.0
        %651 = vmatpush1.msra.mxu0 0.0
        %652 = vmatprep.subr.mxu0 0.0
        %653 = vmatpush1.msra.mxu0 0.0
        %654 = vmatprep.subr.mxu0 0.0
        %655 = vmatpush1.msra.mxu0 0.0
        %656 = vmatprep.subr.mxu0 0.0
        %657 = vmatpush1.msra.mxu0 0.0
        %658 = vmatprep.subr.mxu0 0.0
        %659 = vmatpush1.msra.mxu0 0.0
        %660 = vmatprep.subr.mxu0 0.0
        %661 = vmatpush1.msra.mxu0 0.0
        %662 = vmatprep.subr.mxu0 0.0
        %663 = vmatpush1.msra.mxu0 0.0
        %664 = vmatprep.subr.mxu0 0.0
        %665 = vmatpush1.msra.mxu0 0.0
        %666 = vmatprep.subr.mxu0 0.0
        %667 = vmatpush1.msra.mxu0 0.0
        %668 = vmatprep.mubr.f32.mxu0 0.0
        %669 = vmatmul.mubr.f32.gmra.mrb[0].mxu0 %v556
        %v670 = vpop.f32.mrb[0].mxu0
        %v671 = vadd.f32 0.0, %v670
        %v672 = vpop.f32.mrb[0].mxu0
        %673 = vmatprep.mubr.f32.mxu0 0.0
        %674 = vmatmul.mubr.f32.gmra.mrb[0].mxu0 %v557
        %v675 = vpop.f32.mrb[0].mxu0
        %v676 = vadd.f32 0.0, %v675
        %v677 = vpop.f32.mrb[0].mxu0
        %678 = vmatprep.mubr.f32.mxu0 0.0
        %679 = vmatmul.mubr.f32.gmra.mrb[0].mxu0 %v558
        %v680 = vpop.f32.mrb[0].mxu0
        %v681 = vadd.f32 0.0, %v680
        %v682 = vpop.f32.mrb[0].mxu0
        %683 = vmatprep.mubr.f32.mxu0 0.0
        %684 = vmatmul.mubr.f32.gmra.mrb[0].mxu0 %v559
        %v685 = vpop.f32.mrb[0].mxu0
        %v686 = vadd.f32 0.0, %v685
        %v687 = vpop.f32.mrb[0].mxu0
        %688 = vmatprep.mubr.f32.mxu0 0.0
        %689 = vmatmul.mubr.f32.gmra.mrb[0].mxu0 %v560
        %v690 = vpop.f32.mrb[0].mxu0
        %v691 = vadd.f32 0.0, %v690
        %v692 = vpop.f32.mrb[0].mxu0
        %693 = vmatprep.mubr.f32.mxu0 0.0
        %694 = vmatmul.mubr.f32.gmra.mrb[0].mxu0 %v561
        %v695 = vpop.f32.mrb[0].mxu0
        %v696 = vadd.f32 0.0, %v695
        %v697 = vpop.f32.mrb[0].mxu0
        %698 = vmatprep.mubr.f32.mxu0 0.0
        %699 = vmatmul.mubr.f32.gmra.mrb[0].mxu0 %v562
        %v700 = vpop.f32.mrb[0].mxu0
        %v701 = vadd.f32 0.0, %v700
        %v702 = vpop.f32.mrb[0].mxu0
        %703 = vmatprep.mubr.f32.mxu0 0.0
        %704 = vmatmul.mubr.f32.gmra.mrb[0].mxu0 %v563
        %v705 = vpop.f32.mrb[0].mxu0
        %v706 = vadd.f32 0.0, %v705
        %v707 = vpop.f32.mrb[0].mxu0
        %708 = vmatprep.mubr.f32.mxu0 0.0
        %709 = vmatmul.mubr.f32.gmra.mrb[0].mxu0 %v564
        %v710 = vpop.f32.mrb[0].mxu0
        %v711 = vadd.f32 0.0, %v710
        %v712 = vpop.f32.mrb[0].mxu0
        %713 = vmatprep.mubr.f32.mxu0 0.0
        %714 = vmatmul.mubr.f32.gmra.mrb[0].mxu0 %v565
        %v715 = vpop.f32.mrb[0].mxu0
        %v716 = vadd.f32 0.0, %v715
        %v717 = vpop.f32.mrb[0].mxu0
        %718 = vmatprep.mubr.f32.mxu0 0.0
        %719 = vmatmul.mubr.f32.gmra.mrb[0].mxu0 %v566
        %v720 = vpop.f32.mrb[0].mxu0
        %v721 = vadd.f32 0.0, %v720
        %v722 = vpop.f32.mrb[0].mxu0
        %723 = vmatprep.mubr.f32.mxu0 0.0
        %724 = vmatmul.mubr.f32.gmra.mrb[0].mxu0 %v567
        %v725 = vpop.f32.mrb[0].mxu0
        %v726 = vadd.f32 0.0, %v725
        %v727 = vpop.f32.mrb[0].mxu0
        %728 = vmatprep.mubr.f32.mxu0 0.0
        %729 = vmatmul.mubr.f32.gmra.mrb[0].mxu0 %v568
        %v730 = vpop.f32.mrb[0].mxu0
        %v731 = vadd.f32 0.0, %v730
        %v732 = vpop.f32.mrb[0].mxu0
        %733 = vmatprep.mubr.f32.mxu0 0.0
        %734 = vmatmul.mubr.f32.gmra.mrb[0].mxu0 %v569
        %v735 = vpop.f32.mrb[0].mxu0
        %v736 = vadd.f32 0.0, %v735
        %v737 = vpop.f32.mrb[0].mxu0
        %738 = vmatprep.mubr.f32.mxu0 0.0
        %739 = vmatmul.mubr.f32.gmra.mrb[0].mxu0 %v570
        %v740 = vpop.f32.mrb[0].mxu0
        %v741 = vadd.f32 0.0, %v740
        %v742 = vpop.f32.mrb[0].mxu0
        %743 = vmatprep.mubr.f32.mxu0 0.0
        %744 = vmatmul.mubr.f32.gmra.mrb[0].mxu0 %v571
        %v745 = vpop.f32.mrb[0].mxu0
        %v746 = vadd.f32 0.0, %v745
        %v747 = vpop.f32.mrb[0].mxu0
        %748 = vmatprep.mubr.f32.mxu0 0.0
        %749 = vmatmul.mubr.f32.gmra.mrb[0].mxu0 %v572
        %v750 = vpop.f32.mrb[0].mxu0
        %v751 = vadd.f32 0.0, %v750
        %v752 = vpop.f32.mrb[0].mxu0
        %753 = vmatprep.mubr.f32.mxu0 0.0
        %754 = vmatmul.mubr.f32.gmra.mrb[0].mxu0 %v573
        %v755 = vpop.f32.mrb[0].mxu0
        %v756 = vadd.f32 0.0, %v755
        %v757 = vpop.f32.mrb[0].mxu0
        %758 = vmatprep.mubr.f32.mxu0 0.0
        %759 = vmatmul.mubr.f32.gmra.mrb[0].mxu0 %v574
        %v760 = vpop.f32.mrb[0].mxu0
        %v761 = vadd.f32 0.0, %v760
        %v762 = vpop.f32.mrb[0].mxu0
        %763 = vmatprep.mubr.f32.mxu0 0.0
        %764 = vmatmul.mubr.f32.gmra.mrb[0].mxu0 %v575
        %v765 = vpop.f32.mrb[0].mxu0
        %v766 = vadd.f32 0.0, %v765
        %v767 = vpop.f32.mrb[0].mxu0
        %768 = vmatprep.mubr.f32.mxu0 0.0
        %769 = vmatmul.mubr.f32.gmra.mrb[0].mxu0 %v576
        %v770 = vpop.f32.mrb[0].mxu0
        %v771 = vadd.f32 0.0, %v770
        %v772 = vpop.f32.mrb[0].mxu0
        %773 = vmatprep.mubr.f32.mxu0 0.0
        %774 = vmatmul.mubr.f32.gmra.mrb[0].mxu0 %v577
        %v775 = vpop.f32.mrb[0].mxu0
        %v776 = vadd.f32 0.0, %v775
        %v777 = vpop.f32.mrb[0].mxu0
        %778 = vmatprep.mubr.f32.mxu0 0.0
        %779 = vmatmul.mubr.f32.gmra.mrb[0].mxu0 %v578
        %v780 = vpop.f32.mrb[0].mxu0
        %v781 = vadd.f32 0.0, %v780
        %v782 = vpop.f32.mrb[0].mxu0
        %783 = vmatprep.mubr.f32.mxu0 0.0
        %784 = vmatmul.mubr.f32.gmra.mrb[0].mxu0 %v579
        %v785 = vpop.f32.mrb[0].mxu0
        %v786 = vadd.f32 0.0, %v785
        %v787 = vpop.f32.mrb[0].mxu0
        %788 = vmatprep.mubr.f32.mxu0 0.0
        %789 = vmatmul.mubr.f32.gmra.mrb[0].mxu0 %v580
        %v790 = vpop.f32.mrb[0].mxu0
        %v791 = vadd.f32 0.0, %v790
        %v792 = vpop.f32.mrb[0].mxu0
        %793 = vmatprep.mubr.f32.mxu0 0.0
        %794 = vmatmul.mubr.f32.gmra.mrb[0].mxu0 %v581
        %v795 = vpop.f32.mrb[0].mxu0
        %v796 = vadd.f32 0.0, %v795
        %v797 = vpop.f32.mrb[0].mxu0
        %798 = vmatprep.mubr.f32.mxu0 0.0
        %799 = vmatmul.mubr.f32.gmra.mrb[0].mxu0 %v582
        %v800 = vpop.f32.mrb[0].mxu0
        %v801 = vadd.f32 0.0, %v800
        %v802 = vpop.f32.mrb[0].mxu0
        %803 = vmatprep.mubr.f32.mxu0 0.0
        %804 = vmatmul.mubr.f32.gmra.mrb[0].mxu0 %v583
        %v805 = vpop.f32.mrb[0].mxu0
        %v806 = vadd.f32 0.0, %v805
        %v807 = vpop.f32.mrb[0].mxu0
        %808 = vmatprep.mubr.f32.mxu0 0.0
        %809 = vmatmul.mubr.f32.gmra.mrb[0].mxu0 %v584
        %v810 = vpop.f32.mrb[0].mxu0
        %v811 = vadd.f32 0.0, %v810
        %v812 = vpop.f32.mrb[0].mxu0
        %813 = vmatprep.mubr.f32.mxu0 0.0
        %814 = vmatmul.mubr.f32.gmra.mrb[0].mxu0 %v585
        %v815 = vpop.f32.mrb[0].mxu0
        %v816 = vadd.f32 0.0, %v815
        %v817 = vpop.f32.mrb[0].mxu0
        %818 = vmatprep.mubr.f32.mxu0 0.0
        %819 = vmatmul.mubr.f32.gmra.mrb[0].mxu0 %v586
        %v820 = vpop.f32.mrb[0].mxu0
        %v821 = vadd.f32 0.0, %v820
        %v822 = vpop.f32.mrb[0].mxu0
        %823 = vmatprep.mubr.f32.mxu0 0.0
        %824 = vmatmul.mubr.f32.gmra.mrb[0].mxu0 %v587
        %v825 = vpop.f32.mrb[0].mxu0
        %v826 = vadd.f32 0.0, %v825
        %v827 = vpop.f32.mrb[0].mxu0
        %828 = vdwg.mxu0
        %v829 = vsub.f32 0.0, %v671
        %v830 = vsub.f32 0.0, %v676
        %v831 = vsub.f32 0.0, %v681
        %v832 = vsub.f32 0.0, %v686
        %v833 = vsub.f32 0.0, %v691
        %v834 = vsub.f32 0.0, %v696
        %v835 = vsub.f32 0.0, %v701
        %v836 = vsub.f32 0.0, %v706
        %v837 = vsub.f32 0.0, %v711
        %v838 = vsub.f32 0.0, %v716
        %v839 = vsub.f32 0.0, %v721
        %v840 = vsub.f32 0.0, %v726
        %v841 = vsub.f32 0.0, %v731
        %v842 = vsub.f32 0.0, %v736
        %v843 = vsub.f32 0.0, %v741
        %v844 = vsub.f32 0.0, %v746
        %v845 = vsub.f32 0.0, %v751
        %v846 = vsub.f32 0.0, %v756
        %v847 = vsub.f32 0.0, %v761
        %v848 = vsub.f32 0.0, %v766
        %v849 = vsub.f32 0.0, %v771
        %v850 = vsub.f32 0.0, %v776
        %v851 = vsub.f32 0.0, %v781
        %v852 = vsub.f32 0.0, %v786
        %v853 = vsub.f32 0.0, %v791
        %v854 = vsub.f32 0.0, %v796
        %v855 = vsub.f32 0.0, %v801
        %v856 = vsub.f32 0.0, %v806
        %v857 = vsub.f32 0.0, %v811
        %v858 = vsub.f32 0.0, %v816
        %v859 = vsub.f32 0.0, %v821
        %v860 = vsub.f32 0.0, %v826
        %v861 = vmul.f32 %v829, 1.442695
        %v862 = vpow.pop %v861
        %v863 = vmul.f32 %v830, 1.442695
        %v864 = vpow.pop %v863
        %v865 = vmul.f32 %v831, 1.442695
        %v866 = vpow.pop %v865
        %v867 = vmul.f32 %v832, 1.442695
        %v868 = vpow.pop %v867
        %v869 = vmul.f32 %v833, 1.442695
        %v870 = vpow.pop %v869
        %v871 = vmul.f32 %v834, 1.442695
        %v872 = vpow.pop %v871
        %v873 = vmul.f32 %v835, 1.442695
        %v874 = vpow.pop %v873
        %v875 = vmul.f32 %v836, 1.442695
        %v876 = vpow.pop %v875
        %v877 = vmul.f32 %v837, 1.442695
        %v878 = vpow.pop %v877
        %v879 = vmul.f32 %v838, 1.442695
        %v880 = vpow.pop %v879
        %v881 = vmul.f32 %v839, 1.442695
        %v882 = vpow.pop %v881
        %v883 = vmul.f32 %v840, 1.442695
        %v884 = vpow.pop %v883
        %v885 = vmul.f32 %v841, 1.442695
        %v886 = vpow.pop %v885
        %v887 = vmul.f32 %v842, 1.442695
        %v888 = vpow.pop %v887
        %v889 = vmul.f32 %v843, 1.442695
        %v890 = vpow.pop %v889
        %v891 = vmul.f32 %v844, 1.442695
        %v892 = vpow.pop %v891
        %v893 = vmul.f32 %v845, 1.442695
        %v894 = vpow.pop %v893
        %v895 = vmul.f32 %v846, 1.442695
        %v896 = vpow.pop %v895
        %v897 = vmul.f32 %v847, 1.442695
        %v898 = vpow.pop %v897
        %v899 = vmul.f32 %v848, 1.442695
        %v900 = vpow.pop %v899
        %v901 = vmul.f32 %v849, 1.442695
        %v902 = vpow.pop %v901
        %v903 = vmul.f32 %v850, 1.442695
        %v904 = vpow.pop %v903
        %v905 = vmul.f32 %v851, 1.442695
        %v906 = vpow.pop %v905
        %v907 = vmul.f32 %v852, 1.442695
        %v908 = vpow.pop %v907
        %v909 = vmul.f32 %v853, 1.442695
        %v910 = vpow.pop %v909
        %v911 = vmul.f32 %v854, 1.442695
        %v912 = vpow.pop %v911
        %v913 = vmul.f32 %v855, 1.442695
        %v914 = vpow.pop %v913
        %v915 = vmul.f32 %v856, 1.442695
        %v916 = vpow.pop %v915
        %v917 = vmul.f32 %v857, 1.442695
        %v918 = vpow.pop %v917
        %v919 = vmul.f32 %v858, 1.442695
        %v920 = vpow.pop %v919
        %v921 = vmul.f32 %v859, 1.442695
        %v922 = vpow.pop %v921
        %v923 = vmul.f32 %v860, 1.442695
        %v924 = vpow.pop %v923
        %v925 = vadd.f32 %v671, %v556
        %v926 = vadd.f32 %v676, %v557
        %v927 = vadd.f32 %v681, %v558
        %v928 = vadd.f32 %v686, %v559
        %v929 = vadd.f32 %v691, %v560
        %v930 = vadd.f32 %v696, %v561
        %v931 = vadd.f32 %v701, %v562
        %v932 = vadd.f32 %v706, %v563
        %v933 = vadd.f32 %v711, %v564
        %v934 = vadd.f32 %v716, %v565
        %v935 = vadd.f32 %v721, %v566
        %v936 = vadd.f32 %v726, %v567
        %v937 = vadd.f32 %v731, %v568
        %v938 = vadd.f32 %v736, %v569
        %v939 = vadd.f32 %v741, %v570
        %v940 = vadd.f32 %v746, %v571
        %v941 = vadd.f32 %v751, %v572
        %v942 = vadd.f32 %v756, %v573
        %v943 = vadd.f32 %v761, %v574
        %v944 = vadd.f32 %v766, %v575
        %v945 = vadd.f32 %v771, %v576
        %v946 = vadd.f32 %v776, %v577
        %v947 = vadd.f32 %v781, %v578
        %v948 = vadd.f32 %v786, %v579
        %v949 = vadd.f32 %v791, %v580
        %v950 = vadd.f32 %v796, %v581
        %v951 = vadd.f32 %v801, %v582
        %v952 = vadd.f32 %v806, %v583
        %v953 = vadd.f32 %v811, %v584
        %v954 = vadd.f32 %v816, %v585
        %v955 = vadd.f32 %v821, %v586
        %v956 = vadd.f32 %v826, %v587
        %v957 = vsub.f32 0.0, %v925
        %v958 = vsub.f32 0.0, %v926
        %v959 = vsub.f32 0.0, %v927
        %v960 = vsub.f32 0.0, %v928
        %v961 = vsub.f32 0.0, %v929
        %v962 = vsub.f32 0.0, %v930
        %v963 = vsub.f32 0.0, %v931
        %v964 = vsub.f32 0.0, %v932
        %v965 = vsub.f32 0.0, %v933
        %v966 = vsub.f32 0.0, %v934
        %v967 = vsub.f32 0.0, %v935
        %v968 = vsub.f32 0.0, %v936
        %v969 = vsub.f32 0.0, %v937
        %v970 = vsub.f32 0.0, %v938
        %v971 = vsub.f32 0.0, %v939
        %v972 = vsub.f32 0.0, %v940
        %v973 = vsub.f32 0.0, %v941
        %v974 = vsub.f32 0.0, %v942
        %v975 = vsub.f32 0.0, %v943
        %v976 = vsub.f32 0.0, %v944
        %v977 = vsub.f32 0.0, %v945
        %v978 = vsub.f32 0.0, %v946
        %v979 = vsub.f32 0.0, %v947
        %v980 = vsub.f32 0.0, %v948
        %v981 = vsub.f32 0.0, %v949
        %v982 = vsub.f32 0.0, %v950
        %v983 = vsub.f32 0.0, %v951
        %v984 = vsub.f32 0.0, %v952
        %v985 = vsub.f32 0.0, %v953
        %v986 = vsub.f32 0.0, %v954
        %v987 = vsub.f32 0.0, %v955
        %v988 = vsub.f32 0.0, %v956
        %v989 = vmul.f32 %v957, 1.442695
        %v990 = vpow.pop %v989
        %v991 = vmul.f32 %v958, 1.442695
        %v992 = vpow.pop %v991
        %v993 = vmul.f32 %v959, 1.442695
        %v994 = vpow.pop %v993
        %v995 = vmul.f32 %v960, 1.442695
        %v996 = vpow.pop %v995
        %v997 = vmul.f32 %v961, 1.442695
        %v998 = vpow.pop %v997
        %v999 = vmul.f32 %v962, 1.442695
        %v1000 = vpow.pop %v999
        %v1001 = vmul.f32 %v963, 1.442695
        %v1002 = vpow.pop %v1001
        %v1003 = vmul.f32 %v964, 1.442695
        %v1004 = vpow.pop %v1003
        %v1005 = vmul.f32 %v965, 1.442695
        %v1006 = vpow.pop %v1005
        %v1007 = vmul.f32 %v966, 1.442695
        %v1008 = vpow.pop %v1007
        %v1009 = vmul.f32 %v967, 1.442695
        %v1010 = vpow.pop %v1009
        %v1011 = vmul.f32 %v968, 1.442695
        %v1012 = vpow.pop %v1011
        %v1013 = vmul.f32 %v969, 1.442695
        %v1014 = vpow.pop %v1013
        %v1015 = vmul.f32 %v970, 1.442695
        %v1016 = vpow.pop %v1015
        %v1017 = vmul.f32 %v971, 1.442695
        %v1018 = vpow.pop %v1017
        %v1019 = vmul.f32 %v972, 1.442695
        %v1020 = vpow.pop %v1019
        %v1021 = vmul.f32 %v973, 1.442695
        %v1022 = vpow.pop %v1021
        %v1023 = vmul.f32 %v974, 1.442695
        %v1024 = vpow.pop %v1023
        %v1025 = vmul.f32 %v975, 1.442695
        %v1026 = vpow.pop %v1025
        %v1027 = vmul.f32 %v976, 1.442695
        %v1028 = vpow.pop %v1027
        %v1029 = vmul.f32 %v977, 1.442695
        %v1030 = vpow.pop %v1029
        %v1031 = vmul.f32 %v978, 1.442695
        %v1032 = vpow.pop %v1031
        %v1033 = vmul.f32 %v979, 1.442695
        %v1034 = vpow.pop %v1033
        %v1035 = vmul.f32 %v980, 1.442695
        %v1036 = vpow.pop %v1035
        %v1037 = vmul.f32 %v981, 1.442695
        %v1038 = vpow.pop %v1037
        %v1039 = vmul.f32 %v982, 1.442695
        %v1040 = vpow.pop %v1039
        %v1041 = vmul.f32 %v983, 1.442695
        %v1042 = vpow.pop %v1041
        %v1043 = vmul.f32 %v984, 1.442695
        %v1044 = vpow.pop %v1043
        %v1045 = vmul.f32 %v985, 1.442695
        %v1046 = vpow.pop %v1045
        %v1047 = vmul.f32 %v986, 1.442695
        %v1048 = vpow.pop %v1047
        %v1049 = vmul.f32 %v987, 1.442695
        %v1050 = vpow.pop %v1049
        %v1051 = vmul.f32 %v988, 1.442695
        %v1052 = vpow.pop %v1051
        %v1053 = vsub.f32 %v862, %v990
        %v1054 = vsub.f32 %v864, %v992
        %v1055 = vsub.f32 %v866, %v994
        %v1056 = vsub.f32 %v868, %v996
        %v1057 = vsub.f32 %v870, %v998
        %v1058 = vsub.f32 %v872, %v1000
        %v1059 = vsub.f32 %v874, %v1002
        %v1060 = vsub.f32 %v876, %v1004
        %v1061 = vsub.f32 %v878, %v1006
        %v1062 = vsub.f32 %v880, %v1008
        %v1063 = vsub.f32 %v882, %v1010
        %v1064 = vsub.f32 %v884, %v1012
        %v1065 = vsub.f32 %v886, %v1014
        %v1066 = vsub.f32 %v888, %v1016
        %v1067 = vsub.f32 %v890, %v1018
        %v1068 = vsub.f32 %v892, %v1020
        %v1069 = vsub.f32 %v894, %v1022
        %v1070 = vsub.f32 %v896, %v1024
        %v1071 = vsub.f32 %v898, %v1026
        %v1072 = vsub.f32 %v900, %v1028
        %v1073 = vsub.f32 %v902, %v1030
        %v1074 = vsub.f32 %v904, %v1032
        %v1075 = vsub.f32 %v906, %v1034
        %v1076 = vsub.f32 %v908, %v1036
        %v1077 = vsub.f32 %v910, %v1038
        %v1078 = vsub.f32 %v912, %v1040
        %v1079 = vsub.f32 %v914, %v1042
        %v1080 = vsub.f32 %v916, %v1044
        %v1081 = vsub.f32 %v918, %v1046
        %v1082 = vsub.f32 %v920, %v1048
        %v1083 = vsub.f32 %v922, %v1050
        %v1084 = vsub.f32 %v924, %v1052
        %v1085 = vld [vmem:[%s294] sm:$0xff]
        %v1086 = vld [vmem:[%s294 + $0x8] sm:$0xff]
        %v1087 = vld [vmem:[%s294 + $0x10] sm:$0xff]
        %v1088 = vld [vmem:[%s294 + $0x18] sm:$0xff]
        %v1089 = vld [vmem:[%s294 + $0x20] sm:$0xff]
        %v1090 = vld [vmem:[%s294 + $0x28] sm:$0xff]
        %v1091 = vld [vmem:[%s294 + $0x30] sm:$0xff]
        %v1092 = vld [vmem:[%s294 + $0x38] sm:$0xff]
        %v1093 = vld [vmem:[%s294 + $0x40] sm:$0xff]
        %v1094 = vld [vmem:[%s294 + $0x48] sm:$0xff]
        %v1095 = vld [vmem:[%s294 + $0x50] sm:$0xff]
        %v1096 = vld [vmem:[%s294 + $0x58] sm:$0xff]
        %v1097 = vld [vmem:[%s294 + $0x60] sm:$0xff]
        %v1098 = vld [vmem:[%s294 + $0x68] sm:$0xff]
        %v1099 = vld [vmem:[%s294 + $0x70] sm:$0xff]
        %v1100 = vld [vmem:[%s294 + $0x78] sm:$0xff]
        %v1101 = vld [vmem:[%s294 + $0x80] sm:$0xff]
        %v1102 = vld [vmem:[%s294 + $0x88] sm:$0xff]
        %v1103 = vld [vmem:[%s294 + $0x90] sm:$0xff]
        %v1104 = vld [vmem:[%s294 + $0x98] sm:$0xff]
        %v1105 = vld [vmem:[%s294 + $0xa0] sm:$0xff]
        %v1106 = vld [vmem:[%s294 + $0xa8] sm:$0xff]
        %v1107 = vld [vmem:[%s294 + $0xb0] sm:$0xff]
        %v1108 = vld [vmem:[%s294 + $0xb8] sm:$0xff]
        %v1109 = vld [vmem:[%s294 + $0xc0] sm:$0xff]
        %v1110 = vld [vmem:[%s294 + $0xc8] sm:$0xff]
        %v1111 = vld [vmem:[%s294 + $0xd0] sm:$0xff]
        %v1112 = vld [vmem:[%s294 + $0xd8] sm:$0xff]
        %v1113 = vld [vmem:[%s294 + $0xe0] sm:$0xff]
        %v1114 = vld [vmem:[%s294 + $0xe8] sm:$0xff]
        %v1115 = vld [vmem:[%s294 + $0xf0] sm:$0xff]
        %v1116 = vld [vmem:[%s294 + $0xf8] sm:$0xff]
        %v1117 = vmul.f32 %v1085, %v1053
        %v1118 = vmul.f32 %v1086, %v1054
        %v1119 = vmul.f32 %v1087, %v1055
        %v1120 = vmul.f32 %v1088, %v1056
        %v1121 = vmul.f32 %v1089, %v1057
        %v1122 = vmul.f32 %v1090, %v1058
        %v1123 = vmul.f32 %v1091, %v1059
        %v1124 = vmul.f32 %v1092, %v1060
        %v1125 = vmul.f32 %v1093, %v1061
        %v1126 = vmul.f32 %v1094, %v1062
        %v1127 = vmul.f32 %v1095, %v1063
        %v1128 = vmul.f32 %v1096, %v1064
        %v1129 = vmul.f32 %v1097, %v1065
        %v1130 = vmul.f32 %v1098, %v1066
        %v1131 = vmul.f32 %v1099, %v1067
        %v1132 = vmul.f32 %v1100, %v1068
        %v1133 = vmul.f32 %v1101, %v1069
        %v1134 = vmul.f32 %v1102, %v1070
        %v1135 = vmul.f32 %v1103, %v1071
        %v1136 = vmul.f32 %v1104, %v1072
        %v1137 = vmul.f32 %v1105, %v1073
        %v1138 = vmul.f32 %v1106, %v1074
        %v1139 = vmul.f32 %v1107, %v1075
        %v1140 = vmul.f32 %v1108, %v1076
        %v1141 = vmul.f32 %v1109, %v1077
        %v1142 = vmul.f32 %v1110, %v1078
        %v1143 = vmul.f32 %v1111, %v1079
        %v1144 = vmul.f32 %v1112, %v1080
        %v1145 = vmul.f32 %v1113, %v1081
        %v1146 = vmul.f32 %v1114, %v1082
        %v1147 = vmul.f32 %v1115, %v1083
        %v1148 = vmul.f32 %v1116, %v1084
        %s1149 = scalar_lea.vmem %s294, 256 [#allocation4]
        %v1150 = vld [vmem:[%s1149] sm:$0xff]
        %v1151 = vld [vmem:[%s1149 + $0x8] sm:$0xff]
        %v1152 = vld [vmem:[%s1149 + $0x10] sm:$0xff]
        %v1153 = vld [vmem:[%s1149 + $0x18] sm:$0xff]
        %v1154 = vld [vmem:[%s1149 + $0x20] sm:$0xff]
        %v1155 = vld [vmem:[%s1149 + $0x28] sm:$0xff]
        %v1156 = vld [vmem:[%s1149 + $0x30] sm:$0xff]
        %v1157 = vld [vmem:[%s1149 + $0x38] sm:$0xff]
        %v1158 = vld [vmem:[%s1149 + $0x40] sm:$0xff]
        %v1159 = vld [vmem:[%s1149 + $0x48] sm:$0xff]
        %v1160 = vld [vmem:[%s1149 + $0x50] sm:$0xff]
        %v1161 = vld [vmem:[%s1149 + $0x58] sm:$0xff]
        %v1162 = vld [vmem:[%s1149 + $0x60] sm:$0xff]
        %v1163 = vld [vmem:[%s1149 + $0x68] sm:$0xff]
        %v1164 = vld [vmem:[%s1149 + $0x70] sm:$0xff]
        %v1165 = vld [vmem:[%s1149 + $0x78] sm:$0xff]
        %v1166 = vld [vmem:[%s1149 + $0x80] sm:$0xff]
        %v1167 = vld [vmem:[%s1149 + $0x88] sm:$0xff]
        %v1168 = vld [vmem:[%s1149 + $0x90] sm:$0xff]
        %v1169 = vld [vmem:[%s1149 + $0x98] sm:$0xff]
        %v1170 = vld [vmem:[%s1149 + $0xa0] sm:$0xff]
        %v1171 = vld [vmem:[%s1149 + $0xa8] sm:$0xff]
        %v1172 = vld [vmem:[%s1149 + $0xb0] sm:$0xff]
        %v1173 = vld [vmem:[%s1149 + $0xb8] sm:$0xff]
        %v1174 = vld [vmem:[%s1149 + $0xc0] sm:$0xff]
        %v1175 = vld [vmem:[%s1149 + $0xc8] sm:$0xff]
        %v1176 = vld [vmem:[%s1149 + $0xd0] sm:$0xff]
        %v1177 = vld [vmem:[%s1149 + $0xd8] sm:$0xff]
        %v1178 = vld [vmem:[%s1149 + $0xe0] sm:$0xff]
        %v1179 = vld [vmem:[%s1149 + $0xe8] sm:$0xff]
        %v1180 = vld [vmem:[%s1149 + $0xf0] sm:$0xff]
        %v1181 = vld [vmem:[%s1149 + $0xf8] sm:$0xff]
        %v1182 = vmul.f32 %v1150, %v1053
        %v1183 = vmul.f32 %v1151, %v1054
        %v1184 = vmul.f32 %v1152, %v1055
        %v1185 = vmul.f32 %v1153, %v1056
        %v1186 = vmul.f32 %v1154, %v1057
        %v1187 = vmul.f32 %v1155, %v1058
        %v1188 = vmul.f32 %v1156, %v1059
        %v1189 = vmul.f32 %v1157, %v1060
        %v1190 = vmul.f32 %v1158, %v1061
        %v1191 = vmul.f32 %v1159, %v1062
        %v1192 = vmul.f32 %v1160, %v1063
        %v1193 = vmul.f32 %v1161, %v1064
        %v1194 = vmul.f32 %v1162, %v1065
        %v1195 = vmul.f32 %v1163, %v1066
        %v1196 = vmul.f32 %v1164, %v1067
        %v1197 = vmul.f32 %v1165, %v1068
        %v1198 = vmul.f32 %v1166, %v1069
        %v1199 = vmul.f32 %v1167, %v1070
        %v1200 = vmul.f32 %v1168, %v1071
        %v1201 = vmul.f32 %v1169, %v1072
        %v1202 = vmul.f32 %v1170, %v1073
        %v1203 = vmul.f32 %v1171, %v1074
        %v1204 = vmul.f32 %v1172, %v1075
        %v1205 = vmul.f32 %v1173, %v1076
        %v1206 = vmul.f32 %v1174, %v1077
        %v1207 = vmul.f32 %v1175, %v1078
        %v1208 = vmul.f32 %v1176, %v1079
        %v1209 = vmul.f32 %v1177, %v1080
        %v1210 = vmul.f32 %v1178, %v1081
        %v1211 = vmul.f32 %v1179, %v1082
        %v1212 = vmul.f32 %v1180, %v1083
        %v1213 = vmul.f32 %v1181, %v1084
        %s1214 = scalar_lea.vmem %s294, 512 [#allocation4]
        %v1215 = vld [vmem:[%s1214] sm:$0xff]
        %v1216 = vld [vmem:[%s1214 + $0x8] sm:$0xff]
        %v1217 = vld [vmem:[%s1214 + $0x10] sm:$0xff]
        %v1218 = vld [vmem:[%s1214 + $0x18] sm:$0xff]
        %v1219 = vld [vmem:[%s1214 + $0x20] sm:$0xff]
        %v1220 = vld [vmem:[%s1214 + $0x28] sm:$0xff]
        %v1221 = vld [vmem:[%s1214 + $0x30] sm:$0xff]
        %v1222 = vld [vmem:[%s1214 + $0x38] sm:$0xff]
        %v1223 = vld [vmem:[%s1214 + $0x40] sm:$0xff]
        %v1224 = vld [vmem:[%s1214 + $0x48] sm:$0xff]
        %v1225 = vld [vmem:[%s1214 + $0x50] sm:$0xff]
        %v1226 = vld [vmem:[%s1214 + $0x58] sm:$0xff]
        %v1227 = vld [vmem:[%s1214 + $0x60] sm:$0xff]
        %v1228 = vld [vmem:[%s1214 + $0x68] sm:$0xff]
        %v1229 = vld [vmem:[%s1214 + $0x70] sm:$0xff]
        %v1230 = vld [vmem:[%s1214 + $0x78] sm:$0xff]
        %v1231 = vld [vmem:[%s1214 + $0x80] sm:$0xff]
        %v1232 = vld [vmem:[%s1214 + $0x88] sm:$0xff]
        %v1233 = vld [vmem:[%s1214 + $0x90] sm:$0xff]
        %v1234 = vld [vmem:[%s1214 + $0x98] sm:$0xff]
        %v1235 = vld [vmem:[%s1214 + $0xa0] sm:$0xff]
        %v1236 = vld [vmem:[%s1214 + $0xa8] sm:$0xff]
        %v1237 = vld [vmem:[%s1214 + $0xb0] sm:$0xff]
        %v1238 = vld [vmem:[%s1214 + $0xb8] sm:$0xff]
        %v1239 = vld [vmem:[%s1214 + $0xc0] sm:$0xff]
        %v1240 = vld [vmem:[%s1214 + $0xc8] sm:$0xff]
        %v1241 = vld [vmem:[%s1214 + $0xd0] sm:$0xff]
        %v1242 = vld [vmem:[%s1214 + $0xd8] sm:$0xff]
        %v1243 = vld [vmem:[%s1214 + $0xe0] sm:$0xff]
        %v1244 = vld [vmem:[%s1214 + $0xe8] sm:$0xff]
        %v1245 = vld [vmem:[%s1214 + $0xf0] sm:$0xff]
        %v1246 = vld [vmem:[%s1214 + $0xf8] sm:$0xff]
        %v1247 = vmul.f32 %v1215, %v1053
        %v1248 = vmul.f32 %v1216, %v1054
        %v1249 = vmul.f32 %v1217, %v1055
        %v1250 = vmul.f32 %v1218, %v1056
        %v1251 = vmul.f32 %v1219, %v1057
        %v1252 = vmul.f32 %v1220, %v1058
        %v1253 = vmul.f32 %v1221, %v1059
        %v1254 = vmul.f32 %v1222, %v1060
        %v1255 = vmul.f32 %v1223, %v1061
        %v1256 = vmul.f32 %v1224, %v1062
        %v1257 = vmul.f32 %v1225, %v1063
        %v1258 = vmul.f32 %v1226, %v1064
        %v1259 = vmul.f32 %v1227, %v1065
        %v1260 = vmul.f32 %v1228, %v1066
        %v1261 = vmul.f32 %v1229, %v1067
        %v1262 = vmul.f32 %v1230, %v1068
        %v1263 = vmul.f32 %v1231, %v1069
        %v1264 = vmul.f32 %v1232, %v1070
        %v1265 = vmul.f32 %v1233, %v1071
        %v1266 = vmul.f32 %v1234, %v1072
        %v1267 = vmul.f32 %v1235, %v1073
        %v1268 = vmul.f32 %v1236, %v1074
        %v1269 = vmul.f32 %v1237, %v1075
        %v1270 = vmul.f32 %v1238, %v1076
        %v1271 = vmul.f32 %v1239, %v1077
        %v1272 = vmul.f32 %v1240, %v1078
        %v1273 = vmul.f32 %v1241, %v1079
        %v1274 = vmul.f32 %v1242, %v1080
        %v1275 = vmul.f32 %v1243, %v1081
        %v1276 = vmul.f32 %v1244, %v1082
        %v1277 = vmul.f32 %v1245, %v1083
        %v1278 = vmul.f32 %v1246, %v1084
        %v1279 = vmul.f32 %v349, %v1053
        %v1280 = vmul.f32 %v350, %v1054
        %v1281 = vmul.f32 %v351, %v1055
        %v1282 = vmul.f32 %v352, %v1056
        %v1283 = vmul.f32 %v353, %v1057
        %v1284 = vmul.f32 %v354, %v1058
        %v1285 = vmul.f32 %v355, %v1059
        %v1286 = vmul.f32 %v356, %v1060
        %v1287 = vmul.f32 %v357, %v1061
        %v1288 = vmul.f32 %v358, %v1062
        %v1289 = vmul.f32 %v359, %v1063
        %v1290 = vmul.f32 %v360, %v1064
        %v1291 = vmul.f32 %v361, %v1065
        %v1292 = vmul.f32 %v362, %v1066
        %v1293 = vmul.f32 %v363, %v1067
        %v1294 = vmul.f32 %v364, %v1068
        %v1295 = vmul.f32 %v365, %v1069
        %v1296 = vmul.f32 %v366, %v1070
        %v1297 = vmul.f32 %v367, %v1071
        %v1298 = vmul.f32 %v368, %v1072
        %v1299 = vmul.f32 %v369, %v1073
        %v1300 = vmul.f32 %v370, %v1074
        %v1301 = vmul.f32 %v371, %v1075
        %v1302 = vmul.f32 %v372, %v1076
        %v1303 = vmul.f32 %v373, %v1077
        %v1304 = vmul.f32 %v374, %v1078
        %v1305 = vmul.f32 %v375, %v1079
        %v1306 = vmul.f32 %v376, %v1080
        %v1307 = vmul.f32 %v377, %v1081
        %v1308 = vmul.f32 %v378, %v1082
        %v1309 = vmul.f32 %v379, %v1083
        %v1310 = vmul.f32 %v380, %v1084
        %v1311 = vld [vmem:[%s4] sm:$0xff]
        %v1312 = vld [vmem:[%s4 + $0x8] sm:$0xff]
        %v1313 = vld [vmem:[%s4 + $0x10] sm:$0xff]
        %v1314 = vld [vmem:[%s4 + $0x18] sm:$0xff]
        %v1315 = vld [vmem:[%s4 + $0x20] sm:$0xff]
        %v1316 = vld [vmem:[%s4 + $0x28] sm:$0xff]
        %v1317 = vld [vmem:[%s4 + $0x30] sm:$0xff]
        %v1318 = vld [vmem:[%s4 + $0x38] sm:$0xff]
        %v1319 = vld [vmem:[%s4 + $0x40] sm:$0xff]
        %v1320 = vld [vmem:[%s4 + $0x48] sm:$0xff]
        %v1321 = vld [vmem:[%s4 + $0x50] sm:$0xff]
        %v1322 = vld [vmem:[%s4 + $0x58] sm:$0xff]
        %v1323 = vld [vmem:[%s4 + $0x60] sm:$0xff]
        %v1324 = vld [vmem:[%s4 + $0x68] sm:$0xff]
        %v1325 = vld [vmem:[%s4 + $0x70] sm:$0xff]
        %v1326 = vld [vmem:[%s4 + $0x78] sm:$0xff]
        %v1327 = vld [vmem:[%s4 + $0x80] sm:$0xff]
        %v1328 = vld [vmem:[%s4 + $0x88] sm:$0xff]
        %v1329 = vld [vmem:[%s4 + $0x90] sm:$0xff]
        %v1330 = vld [vmem:[%s4 + $0x98] sm:$0xff]
        %v1331 = vld [vmem:[%s4 + $0xa0] sm:$0xff]
        %v1332 = vld [vmem:[%s4 + $0xa8] sm:$0xff]
        %v1333 = vld [vmem:[%s4 + $0xb0] sm:$0xff]
        %v1334 = vld [vmem:[%s4 + $0xb8] sm:$0xff]
        %v1335 = vld [vmem:[%s4 + $0xc0] sm:$0xff]
        %v1336 = vld [vmem:[%s4 + $0xc8] sm:$0xff]
        %v1337 = vld [vmem:[%s4 + $0xd0] sm:$0xff]
        %v1338 = vld [vmem:[%s4 + $0xd8] sm:$0xff]
        %v1339 = vld [vmem:[%s4 + $0xe0] sm:$0xff]
        %v1340 = vld [vmem:[%s4 + $0xe8] sm:$0xff]
        %v1341 = vld [vmem:[%s4 + $0xf0] sm:$0xff]
        %v1342 = vld [vmem:[%s4 + $0xf8] sm:$0xff]
        %v1343 = vld [vmem:[%s4 + $0x100] sm:$0xff]
        %v1344 = vld [vmem:[%s4 + $0x108] sm:$0xff]
        %v1345 = vld [vmem:[%s4 + $0x110] sm:$0xff]
        %v1346 = vld [vmem:[%s4 + $0x118] sm:$0xff]
        %v1347 = vld [vmem:[%s4 + $0x120] sm:$0xff]
        %v1348 = vld [vmem:[%s4 + $0x128] sm:$0xff]
        %v1349 = vld [vmem:[%s4 + $0x130] sm:$0xff]
        %v1350 = vld [vmem:[%s4 + $0x138] sm:$0xff]
        %v1351 = vld [vmem:[%s4 + $0x140] sm:$0xff]
        %v1352 = vld [vmem:[%s4 + $0x148] sm:$0xff]
        %v1353 = vld [vmem:[%s4 + $0x150] sm:$0xff]
        %v1354 = vld [vmem:[%s4 + $0x158] sm:$0xff]
        %v1355 = vld [vmem:[%s4 + $0x160] sm:$0xff]
        %v1356 = vld [vmem:[%s4 + $0x168] sm:$0xff]
        %v1357 = vld [vmem:[%s4 + $0x170] sm:$0xff]
        %v1358 = vld [vmem:[%s4 + $0x178] sm:$0xff]
        %v1359 = vld [vmem:[%s4 + $0x180] sm:$0xff]
        %v1360 = vld [vmem:[%s4 + $0x188] sm:$0xff]
        %v1361 = vld [vmem:[%s4 + $0x190] sm:$0xff]
        %v1362 = vld [vmem:[%s4 + $0x198] sm:$0xff]
        %v1363 = vld [vmem:[%s4 + $0x1a0] sm:$0xff]
        %v1364 = vld [vmem:[%s4 + $0x1a8] sm:$0xff]
        %v1365 = vld [vmem:[%s4 + $0x1b0] sm:$0xff]
        %v1366 = vld [vmem:[%s4 + $0x1b8] sm:$0xff]
        %v1367 = vld [vmem:[%s4 + $0x1c0] sm:$0xff]
        %v1368 = vld [vmem:[%s4 + $0x1c8] sm:$0xff]
        %v1369 = vld [vmem:[%s4 + $0x1d0] sm:$0xff]
        %v1370 = vld [vmem:[%s4 + $0x1d8] sm:$0xff]
        %v1371 = vld [vmem:[%s4 + $0x1e0] sm:$0xff]
        %v1372 = vld [vmem:[%s4 + $0x1e8] sm:$0xff]
        %v1373 = vld [vmem:[%s4 + $0x1f0] sm:$0xff]
        %v1374 = vld [vmem:[%s4 + $0x1f8] sm:$0xff]
        %1375 = vmatprep.subr.mxu0 0.0
        %1376 = vmatpush1.msra.mxu0 %v1311
        %1377 = vmatprep.subr.mxu0 0.0
        %1378 = vmatpush1.msra.mxu0 %v1312
        %1379 = vmatprep.subr.mxu0 0.0
        %1380 = vmatpush1.msra.mxu0 %v1313
        %1381 = vmatprep.subr.mxu0 0.0
        %1382 = vmatpush1.msra.mxu0 %v1314
        %1383 = vmatprep.subr.mxu0 0.0
        %1384 = vmatpush1.msra.mxu0 %v1315
        %1385 = vmatprep.subr.mxu0 0.0
        %1386 = vmatpush1.msra.mxu0 %v1316
        %1387 = vmatprep.subr.mxu0 0.0
        %1388 = vmatpush1.msra.mxu0 %v1317
        %1389 = vmatprep.subr.mxu0 0.0
        %1390 = vmatpush1.msra.mxu0 %v1318
        %1391 = vmatprep.subr.mxu0 0.0
        %1392 = vmatpush1.msra.mxu0 %v1319
        %1393 = vmatprep.subr.mxu0 0.0
        %1394 = vmatpush1.msra.mxu0 %v1320
        %1395 = vmatprep.subr.mxu0 0.0
        %1396 = vmatpush1.msra.mxu0 %v1321
        %1397 = vmatprep.subr.mxu0 0.0
        %1398 = vmatpush1.msra.mxu0 %v1322
        %1399 = vmatprep.subr.mxu0 0.0
        %1400 = vmatpush1.msra.mxu0 %v1323
        %1401 = vmatprep.subr.mxu0 0.0
        %1402 = vmatpush1.msra.mxu0 %v1324
        %1403 = vmatprep.subr.mxu0 0.0
        %1404 = vmatpush1.msra.mxu0 %v1325
        %1405 = vmatprep.subr.mxu0 0.0
        %1406 = vmatpush1.msra.mxu0 %v1326
        %1407 = vmatprep.subr.mxu0 0.0
        %1408 = vmatpush1.msra.mxu0 %v1327
        %1409 = vmatprep.subr.mxu0 0.0
        %1410 = vmatpush1.msra.mxu0 %v1328
        %1411 = vmatprep.subr.mxu0 0.0
        %1412 = vmatpush1.msra.mxu0 %v1329
        %1413 = vmatprep.subr.mxu0 0.0
        %1414 = vmatpush1.msra.mxu0 %v1330
        %1415 = vmatprep.subr.mxu0 0.0
        %1416 = vmatpush1.msra.mxu0 %v1331
        %1417 = vmatprep.subr.mxu0 0.0
        %1418 = vmatpush1.msra.mxu0 %v1332
        %1419 = vmatprep.subr.mxu0 0.0
        %1420 = vmatpush1.msra.mxu0 %v1333
        %1421 = vmatprep.subr.mxu0 0.0
        %1422 = vmatpush1.msra.mxu0 %v1334
        %1423 = vmatprep.subr.mxu0 0.0
        %1424 = vmatpush1.msra.mxu0 %v1335
        %1425 = vmatprep.subr.mxu0 0.0
        %1426 = vmatpush1.msra.mxu0 %v1336
        %1427 = vmatprep.subr.mxu0 0.0
        %1428 = vmatpush1.msra.mxu0 %v1337
        %1429 = vmatprep.subr.mxu0 0.0
        %1430 = vmatpush1.msra.mxu0 %v1338
        %1431 = vmatprep.subr.mxu0 0.0
        %1432 = vmatpush1.msra.mxu0 %v1339
        %1433 = vmatprep.subr.mxu0 0.0
        %1434 = vmatpush1.msra.mxu0 %v1340
        %1435 = vmatprep.subr.mxu0 0.0
        %1436 = vmatpush1.msra.mxu0 %v1341
        %1437 = vmatprep.subr.mxu0 0.0
        %1438 = vmatpush1.msra.mxu0 %v1342
        %1439 = vmatprep.mubr.f32.mxu0 %v1182
        %1440 = vmatmul.mubr.f32.gmra.mrb[0].mxu0 %v1117
        %v1441 = vpop.f32.mrb[0].mxu0
        %v1442 = vadd.f32 0.0, %v1441
        %v1443 = vpop.f32.mrb[0].mxu0
        %1444 = vmatprep.mubr.f32.mxu0 %v1183
        %1445 = vmatmul.mubr.f32.gmra.mrb[0].mxu0 %v1118
        %v1446 = vpop.f32.mrb[0].mxu0
        %v1447 = vadd.f32 0.0, %v1446
        %v1448 = vpop.f32.mrb[0].mxu0
        %1449 = vmatprep.mubr.f32.mxu0 %v1184
        %1450 = vmatmul.mubr.f32.gmra.mrb[0].mxu0 %v1119
        %v1451 = vpop.f32.mrb[0].mxu0
        %v1452 = vadd.f32 0.0, %v1451
        %v1453 = vpop.f32.mrb[0].mxu0
        %1454 = vmatprep.mubr.f32.mxu0 %v1185
        %1455 = vmatmul.mubr.f32.gmra.mrb[0].mxu0 %v1120
        %v1456 = vpop.f32.mrb[0].mxu0
        %v1457 = vadd.f32 0.0, %v1456
        %v1458 = vpop.f32.mrb[0].mxu0
        %1459 = vmatprep.mubr.f32.mxu0 %v1186
        %1460 = vmatmul.mubr.f32.gmra.mrb[0].mxu0 %v1121
        %v1461 = vpop.f32.mrb[0].mxu0
        %v1462 = vadd.f32 0.0, %v1461
        %v1463 = vpop.f32.mrb[0].mxu0
        %1464 = vmatprep.mubr.f32.mxu0 %v1187
        %1465 = vmatmul.mubr.f32.gmra.mrb[0].mxu0 %v1122
        %v1466 = vpop.f32.mrb[0].mxu0
        %v1467 = vadd.f32 0.0, %v1466
        %v1468 = vpop.f32.mrb[0].mxu0
        %1469 = vmatprep.mubr.f32.mxu0 %v1188
        %1470 = vmatmul.mubr.f32.gmra.mrb[0].mxu0 %v1123
        %v1471 = vpop.f32.mrb[0].mxu0
        %v1472 = vadd.f32 0.0, %v1471
        %v1473 = vpop.f32.mrb[0].mxu0
        %1474 = vmatprep.mubr.f32.mxu0 %v1189
        %1475 = vmatmul.mubr.f32.gmra.mrb[0].mxu0 %v1124
        %v1476 = vpop.f32.mrb[0].mxu0
        %v1477 = vadd.f32 0.0, %v1476
        %v1478 = vpop.f32.mrb[0].mxu0
        %1479 = vmatprep.mubr.f32.mxu0 %v1190
        %1480 = vmatmul.mubr.f32.gmra.mrb[0].mxu0 %v1125
        %v1481 = vpop.f32.mrb[0].mxu0
        %v1482 = vadd.f32 0.0, %v1481
        %v1483 = vpop.f32.mrb[0].mxu0
        %1484 = vmatprep.mubr.f32.mxu0 %v1191
        %1485 = vmatmul.mubr.f32.gmra.mrb[0].mxu0 %v1126
        %v1486 = vpop.f32.mrb[0].mxu0
        %v1487 = vadd.f32 0.0, %v1486
        %v1488 = vpop.f32.mrb[0].mxu0
        %1489 = vmatprep.mubr.f32.mxu0 %v1192
        %1490 = vmatmul.mubr.f32.gmra.mrb[0].mxu0 %v1127
        %v1491 = vpop.f32.mrb[0].mxu0
        %v1492 = vadd.f32 0.0, %v1491
        %v1493 = vpop.f32.mrb[0].mxu0
        %1494 = vmatprep.mubr.f32.mxu0 %v1193
        %1495 = vmatmul.mubr.f32.gmra.mrb[0].mxu0 %v1128
        %v1496 = vpop.f32.mrb[0].mxu0
        %v1497 = vadd.f32 0.0, %v1496
        %v1498 = vpop.f32.mrb[0].mxu0
        %1499 = vmatprep.mubr.f32.mxu0 %v1194
        %1500 = vmatmul.mubr.f32.gmra.mrb[0].mxu0 %v1129
        %v1501 = vpop.f32.mrb[0].mxu0
        %v1502 = vadd.f32 0.0, %v1501
        %v1503 = vpop.f32.mrb[0].mxu0
        %1504 = vmatprep.mubr.f32.mxu0 %v1195
        %1505 = vmatmul.mubr.f32.gmra.mrb[0].mxu0 %v1130
        %v1506 = vpop.f32.mrb[0].mxu0
        %v1507 = vadd.f32 0.0, %v1506
        %v1508 = vpop.f32.mrb[0].mxu0
        %1509 = vmatprep.mubr.f32.mxu0 %v1196
        %1510 = vmatmul.mubr.f32.gmra.mrb[0].mxu0 %v1131
        %v1511 = vpop.f32.mrb[0].mxu0
        %v1512 = vadd.f32 0.0, %v1511
        %v1513 = vpop.f32.mrb[0].mxu0
        %1514 = vmatprep.mubr.f32.mxu0 %v1197
        %1515 = vmatmul.mubr.f32.gmra.mrb[0].mxu0 %v1132
        %v1516 = vpop.f32.mrb[0].mxu0
        %v1517 = vadd.f32 0.0, %v1516
        %v1518 = vpop.f32.mrb[0].mxu0
        %1519 = vmatprep.mubr.f32.mxu0 %v1198
        %1520 = vmatmul.mubr.f32.gmra.mrb[0].mxu0 %v1133
        %v1521 = vpop.f32.mrb[0].mxu0
        %v1522 = vadd.f32 0.0, %v1521
        %v1523 = vpop.f32.mrb[0].mxu0
        %1524 = vmatprep.mubr.f32.mxu0 %v1199
        %1525 = vmatmul.mubr.f32.gmra.mrb[0].mxu0 %v1134
        %v1526 = vpop.f32.mrb[0].mxu0
        %v1527 = vadd.f32 0.0, %v1526
        %v1528 = vpop.f32.mrb[0].mxu0
        %1529 = vmatprep.mubr.f32.mxu0 %v1200
        %1530 = vmatmul.mubr.f32.gmra.mrb[0].mxu0 %v1135
        %v1531 = vpop.f32.mrb[0].mxu0
        %v1532 = vadd.f32 0.0, %v1531
        %v1533 = vpop.f32.mrb[0].mxu0
        %1534 = vmatprep.mubr.f32.mxu0 %v1201
        %1535 = vmatmul.mubr.f32.gmra.mrb[0].mxu0 %v1136
        %v1536 = vpop.f32.mrb[0].mxu0
        %v1537 = vadd.f32 0.0, %v1536
        %v1538 = vpop.f32.mrb[0].mxu0
        %1539 = vmatprep.mubr.f32.mxu0 %v1202
        %1540 = vmatmul.mubr.f32.gmra.mrb[0].mxu0 %v1137
        %v1541 = vpop.f32.mrb[0].mxu0
        %v1542 = vadd.f32 0.0, %v1541
        %v1543 = vpop.f32.mrb[0].mxu0
        %1544 = vmatprep.mubr.f32.mxu0 %v1203
        %1545 = vmatmul.mubr.f32.gmra.mrb[0].mxu0 %v1138
        %v1546 = vpop.f32.mrb[0].mxu0
        %v1547 = vadd.f32 0.0, %v1546
        %v1548 = vpop.f32.mrb[0].mxu0
        %1549 = vmatprep.mubr.f32.mxu0 %v1204
        %1550 = vmatmul.mubr.f32.gmra.mrb[0].mxu0 %v1139
        %v1551 = vpop.f32.mrb[0].mxu0
        %v1552 = vadd.f32 0.0, %v1551
        %v1553 = vpop.f32.mrb[0].mxu0
        %1554 = vmatprep.mubr.f32.mxu0 %v1205
        %1555 = vmatmul.mubr.f32.gmra.mrb[0].mxu0 %v1140
        %v1556 = vpop.f32.mrb[0].mxu0
        %v1557 = vadd.f32 0.0, %v1556
        %v1558 = vpop.f32.mrb[0].mxu0
        %1559 = vmatprep.mubr.f32.mxu0 %v1206
        %1560 = vmatmul.mubr.f32.gmra.mrb[0].mxu0 %v1141
        %v1561 = vpop.f32.mrb[0].mxu0
        %v1562 = vadd.f32 0.0, %v1561
        %v1563 = vpop.f32.mrb[0].mxu0
        %1564 = vmatprep.mubr.f32.mxu0 %v1207
        %1565 = vmatmul.mubr.f32.gmra.mrb[0].mxu0 %v1142
        %v1566 = vpop.f32.mrb[0].mxu0
        %v1567 = vadd.f32 0.0, %v1566
        %v1568 = vpop.f32.mrb[0].mxu0
        %1569 = vmatprep.mubr.f32.mxu0 %v1208
        %1570 = vmatmul.mubr.f32.gmra.mrb[0].mxu0 %v1143
        %v1571 = vpop.f32.mrb[0].mxu0
        %v1572 = vadd.f32 0.0, %v1571
        %v1573 = vpop.f32.mrb[0].mxu0
        %1574 = vmatprep.mubr.f32.mxu0 %v1209
        %1575 = vmatmul.mubr.f32.gmra.mrb[0].mxu0 %v1144
        %v1576 = vpop.f32.mrb[0].mxu0
        %v1577 = vadd.f32 0.0, %v1576
        %v1578 = vpop.f32.mrb[0].mxu0
        %1579 = vmatprep.mubr.f32.mxu0 %v1210
        %1580 = vmatmul.mubr.f32.gmra.mrb[0].mxu0 %v1145
        %v1581 = vpop.f32.mrb[0].mxu0
        %v1582 = vadd.f32 0.0, %v1581
        %v1583 = vpop.f32.mrb[0].mxu0
        %1584 = vmatprep.mubr.f32.mxu0 %v1211
        %1585 = vmatmul.mubr.f32.gmra.mrb[0].mxu0 %v1146
        %v1586 = vpop.f32.mrb[0].mxu0
        %v1587 = vadd.f32 0.0, %v1586
        %v1588 = vpop.f32.mrb[0].mxu0
        %1589 = vmatprep.mubr.f32.mxu0 %v1212
        %1590 = vmatmul.mubr.f32.gmra.mrb[0].mxu0 %v1147
        %v1591 = vpop.f32.mrb[0].mxu0
        %v1592 = vadd.f32 0.0, %v1591
        %v1593 = vpop.f32.mrb[0].mxu0
        %1594 = vmatprep.mubr.f32.mxu0 %v1213
        %1595 = vmatmul.mubr.f32.gmra.mrb[0].mxu0 %v1148
        %v1596 = vpop.f32.mrb[0].mxu0
        %v1597 = vadd.f32 0.0, %v1596
        %v1598 = vpop.f32.mrb[0].mxu0
        %1599 = vdwg.mxu0
        %1600 = vmatprep.subr.mxu0 0.0
        %1601 = vmatpush1.msra.mxu0 %v1343
        %1602 = vmatprep.subr.mxu0 0.0
        %1603 = vmatpush1.msra.mxu0 %v1344
        %1604 = vmatprep.subr.mxu0 0.0
        %1605 = vmatpush1.msra.mxu0 %v1345
        %1606 = vmatprep.subr.mxu0 0.0
        %1607 = vmatpush1.msra.mxu0 %v1346
        %1608 = vmatprep.subr.mxu0 0.0
        %1609 = vmatpush1.msra.mxu0 %v1347
        %1610 = vmatprep.subr.mxu0 0.0
        %1611 = vmatpush1.msra.mxu0 %v1348
        %1612 = vmatprep.subr.mxu0 0.0
        %1613 = vmatpush1.msra.mxu0 %v1349
        %1614 = vmatprep.subr.mxu0 0.0
        %1615 = vmatpush1.msra.mxu0 %v1350
        %1616 = vmatprep.subr.mxu0 0.0
        %1617 = vmatpush1.msra.mxu0 %v1351
        %1618 = vmatprep.subr.mxu0 0.0
        %1619 = vmatpush1.msra.mxu0 %v1352
        %1620 = vmatprep.subr.mxu0 0.0
        %1621 = vmatpush1.msra.mxu0 %v1353
        %1622 = vmatprep.subr.mxu0 0.0
        %1623 = vmatpush1.msra.mxu0 %v1354
        %1624 = vmatprep.subr.mxu0 0.0
        %1625 = vmatpush1.msra.mxu0 %v1355
        %1626 = vmatprep.subr.mxu0 0.0
        %1627 = vmatpush1.msra.mxu0 %v1356
        %1628 = vmatprep.subr.mxu0 0.0
        %1629 = vmatpush1.msra.mxu0 %v1357
        %1630 = vmatprep.subr.mxu0 0.0
        %1631 = vmatpush1.msra.mxu0 %v1358
        %1632 = vmatprep.subr.mxu0 0.0
        %1633 = vmatpush1.msra.mxu0 %v1359
        %1634 = vmatprep.subr.mxu0 0.0
        %1635 = vmatpush1.msra.mxu0 %v1360
        %1636 = vmatprep.subr.mxu0 0.0
        %1637 = vmatpush1.msra.mxu0 %v1361
        %1638 = vmatprep.subr.mxu0 0.0
        %1639 = vmatpush1.msra.mxu0 %v1362
        %1640 = vmatprep.subr.mxu0 0.0
        %1641 = vmatpush1.msra.mxu0 %v1363
        %1642 = vmatprep.subr.mxu0 0.0
        %1643 = vmatpush1.msra.mxu0 %v1364
        %1644 = vmatprep.subr.mxu0 0.0
        %1645 = vmatpush1.msra.mxu0 %v1365
        %1646 = vmatprep.subr.mxu0 0.0
        %1647 = vmatpush1.msra.mxu0 %v1366
        %1648 = vmatprep.subr.mxu0 0.0
        %1649 = vmatpush1.msra.mxu0 %v1367
        %1650 = vmatprep.subr.mxu0 0.0
        %1651 = vmatpush1.msra.mxu0 %v1368
        %1652 = vmatprep.subr.mxu0 0.0
        %1653 = vmatpush1.msra.mxu0 %v1369
        %1654 = vmatprep.subr.mxu0 0.0
        %1655 = vmatpush1.msra.mxu0 %v1370
        %1656 = vmatprep.subr.mxu0 0.0
        %1657 = vmatpush1.msra.mxu0 %v1371
        %1658 = vmatprep.subr.mxu0 0.0
        %1659 = vmatpush1.msra.mxu0 %v1372
        %1660 = vmatprep.subr.mxu0 0.0
        %1661 = vmatpush1.msra.mxu0 %v1373
        %1662 = vmatprep.subr.mxu0 0.0
        %1663 = vmatpush1.msra.mxu0 %v1374
        %1664 = vmatprep.mubr.f32.mxu0 %v1279
        %1665 = vmatmul.mubr.f32.gmra.mrb[0].mxu0 %v1247
        %v1666 = vpop.f32.mrb[0].mxu0
        %v1667 = vadd.f32 %v1442, %v1666
        %v1668 = vpop.f32.mrb[0].mxu0
        %1669 = vmatprep.mubr.f32.mxu0 %v1280
        %1670 = vmatmul.mubr.f32.gmra.mrb[0].mxu0 %v1248
        %v1671 = vpop.f32.mrb[0].mxu0
        %v1672 = vadd.f32 %v1447, %v1671
        %v1673 = vpop.f32.mrb[0].mxu0
        %1674 = vmatprep.mubr.f32.mxu0 %v1281
        %1675 = vmatmul.mubr.f32.gmra.mrb[0].mxu0 %v1249
        %v1676 = vpop.f32.mrb[0].mxu0
        %v1677 = vadd.f32 %v1452, %v1676
        %v1678 = vpop.f32.mrb[0].mxu0
        %1679 = vmatprep.mubr.f32.mxu0 %v1282
        %1680 = vmatmul.mubr.f32.gmra.mrb[0].mxu0 %v1250
        %v1681 = vpop.f32.mrb[0].mxu0
        %v1682 = vadd.f32 %v1457, %v1681
        %v1683 = vpop.f32.mrb[0].mxu0
        %1684 = vmatprep.mubr.f32.mxu0 %v1283
        %1685 = vmatmul.mubr.f32.gmra.mrb[0].mxu0 %v1251
        %v1686 = vpop.f32.mrb[0].mxu0
        %v1687 = vadd.f32 %v1462, %v1686
        %v1688 = vpop.f32.mrb[0].mxu0
        %1689 = vmatprep.mubr.f32.mxu0 %v1284
        %1690 = vmatmul.mubr.f32.gmra.mrb[0].mxu0 %v1252
        %v1691 = vpop.f32.mrb[0].mxu0
        %v1692 = vadd.f32 %v1467, %v1691
        %v1693 = vpop.f32.mrb[0].mxu0
        %1694 = vmatprep.mubr.f32.mxu0 %v1285
        %1695 = vmatmul.mubr.f32.gmra.mrb[0].mxu0 %v1253
        %v1696 = vpop.f32.mrb[0].mxu0
        %v1697 = vadd.f32 %v1472, %v1696
        %v1698 = vpop.f32.mrb[0].mxu0
        %1699 = vmatprep.mubr.f32.mxu0 %v1286
        %1700 = vmatmul.mubr.f32.gmra.mrb[0].mxu0 %v1254
        %v1701 = vpop.f32.mrb[0].mxu0
        %v1702 = vadd.f32 %v1477, %v1701
        %v1703 = vpop.f32.mrb[0].mxu0
        %1704 = vmatprep.mubr.f32.mxu0 %v1287
        %1705 = vmatmul.mubr.f32.gmra.mrb[0].mxu0 %v1255
        %v1706 = vpop.f32.mrb[0].mxu0
        %v1707 = vadd.f32 %v1482, %v1706
        %v1708 = vpop.f32.mrb[0].mxu0
        %1709 = vmatprep.mubr.f32.mxu0 %v1288
        %1710 = vmatmul.mubr.f32.gmra.mrb[0].mxu0 %v1256
        %v1711 = vpop.f32.mrb[0].mxu0
        %v1712 = vadd.f32 %v1487, %v1711
        %v1713 = vpop.f32.mrb[0].mxu0
        %1714 = vmatprep.mubr.f32.mxu0 %v1289
        %1715 = vmatmul.mubr.f32.gmra.mrb[0].mxu0 %v1257
        %v1716 = vpop.f32.mrb[0].mxu0
        %v1717 = vadd.f32 %v1492, %v1716
        %v1718 = vpop.f32.mrb[0].mxu0
        %1719 = vmatprep.mubr.f32.mxu0 %v1290
        %1720 = vmatmul.mubr.f32.gmra.mrb[0].mxu0 %v1258
        %v1721 = vpop.f32.mrb[0].mxu0
        %v1722 = vadd.f32 %v1497, %v1721
        %v1723 = vpop.f32.mrb[0].mxu0
        %1724 = vmatprep.mubr.f32.mxu0 %v1291
        %1725 = vmatmul.mubr.f32.gmra.mrb[0].mxu0 %v1259
        %v1726 = vpop.f32.mrb[0].mxu0
        %v1727 = vadd.f32 %v1502, %v1726
        %v1728 = vpop.f32.mrb[0].mxu0
        %1729 = vmatprep.mubr.f32.mxu0 %v1292
        %1730 = vmatmul.mubr.f32.gmra.mrb[0].mxu0 %v1260
        %v1731 = vpop.f32.mrb[0].mxu0
        %v1732 = vadd.f32 %v1507, %v1731
        %v1733 = vpop.f32.mrb[0].mxu0
        %1734 = vmatprep.mubr.f32.mxu0 %v1293
        %1735 = vmatmul.mubr.f32.gmra.mrb[0].mxu0 %v1261
        %v1736 = vpop.f32.mrb[0].mxu0
        %v1737 = vadd.f32 %v1512, %v1736
        %v1738 = vpop.f32.mrb[0].mxu0
        %1739 = vmatprep.mubr.f32.mxu0 %v1294
        %1740 = vmatmul.mubr.f32.gmra.mrb[0].mxu0 %v1262
        %v1741 = vpop.f32.mrb[0].mxu0
        %v1742 = vadd.f32 %v1517, %v1741
        %v1743 = vpop.f32.mrb[0].mxu0
        %1744 = vmatprep.mubr.f32.mxu0 %v1295
        %1745 = vmatmul.mubr.f32.gmra.mrb[0].mxu0 %v1263
        %v1746 = vpop.f32.mrb[0].mxu0
        %v1747 = vadd.f32 %v1522, %v1746
        %v1748 = vpop.f32.mrb[0].mxu0
        %1749 = vmatprep.mubr.f32.mxu0 %v1296
        %1750 = vmatmul.mubr.f32.gmra.mrb[0].mxu0 %v1264
        %v1751 = vpop.f32.mrb[0].mxu0
        %v1752 = vadd.f32 %v1527, %v1751
        %v1753 = vpop.f32.mrb[0].mxu0
        %1754 = vmatprep.mubr.f32.mxu0 %v1297
        %1755 = vmatmul.mubr.f32.gmra.mrb[0].mxu0 %v1265
        %v1756 = vpop.f32.mrb[0].mxu0
        %v1757 = vadd.f32 %v1532, %v1756
        %v1758 = vpop.f32.mrb[0].mxu0
        %1759 = vmatprep.mubr.f32.mxu0 %v1298
        %1760 = vmatmul.mubr.f32.gmra.mrb[0].mxu0 %v1266
        %v1761 = vpop.f32.mrb[0].mxu0
        %v1762 = vadd.f32 %v1537, %v1761
        %v1763 = vpop.f32.mrb[0].mxu0
        %1764 = vmatprep.mubr.f32.mxu0 %v1299
        %1765 = vmatmul.mubr.f32.gmra.mrb[0].mxu0 %v1267
        %v1766 = vpop.f32.mrb[0].mxu0
        %v1767 = vadd.f32 %v1542, %v1766
        %v1768 = vpop.f32.mrb[0].mxu0
        %1769 = vmatprep.mubr.f32.mxu0 %v1300
        %1770 = vmatmul.mubr.f32.gmra.mrb[0].mxu0 %v1268
        %v1771 = vpop.f32.mrb[0].mxu0
        %v1772 = vadd.f32 %v1547, %v1771
        %v1773 = vpop.f32.mrb[0].mxu0
        %1774 = vmatprep.mubr.f32.mxu0 %v1301
        %1775 = vmatmul.mubr.f32.gmra.mrb[0].mxu0 %v1269
        %v1776 = vpop.f32.mrb[0].mxu0
        %v1777 = vadd.f32 %v1552, %v1776
        %v1778 = vpop.f32.mrb[0].mxu0
        %1779 = vmatprep.mubr.f32.mxu0 %v1302
        %1780 = vmatmul.mubr.f32.gmra.mrb[0].mxu0 %v1270
        %v1781 = vpop.f32.mrb[0].mxu0
        %v1782 = vadd.f32 %v1557, %v1781
        %v1783 = vpop.f32.mrb[0].mxu0
        %1784 = vmatprep.mubr.f32.mxu0 %v1303
        %1785 = vmatmul.mubr.f32.gmra.mrb[0].mxu0 %v1271
        %v1786 = vpop.f32.mrb[0].mxu0
        %v1787 = vadd.f32 %v1562, %v1786
        %v1788 = vpop.f32.mrb[0].mxu0
        %1789 = vmatprep.mubr.f32.mxu0 %v1304
        %1790 = vmatmul.mubr.f32.gmra.mrb[0].mxu0 %v1272
        %v1791 = vpop.f32.mrb[0].mxu0
        %v1792 = vadd.f32 %v1567, %v1791
        %v1793 = vpop.f32.mrb[0].mxu0
        %1794 = vmatprep.mubr.f32.mxu0 %v1305
        %1795 = vmatmul.mubr.f32.gmra.mrb[0].mxu0 %v1273
        %v1796 = vpop.f32.mrb[0].mxu0
        %v1797 = vadd.f32 %v1572, %v1796
        %v1798 = vpop.f32.mrb[0].mxu0
        %1799 = vmatprep.mubr.f32.mxu0 %v1306
        %1800 = vmatmul.mubr.f32.gmra.mrb[0].mxu0 %v1274
        %v1801 = vpop.f32.mrb[0].mxu0
        %v1802 = vadd.f32 %v1577, %v1801
        %v1803 = vpop.f32.mrb[0].mxu0
        %1804 = vmatprep.mubr.f32.mxu0 %v1307
        %1805 = vmatmul.mubr.f32.gmra.mrb[0].mxu0 %v1275
        %v1806 = vpop.f32.mrb[0].mxu0
        %v1807 = vadd.f32 %v1582, %v1806
        %v1808 = vpop.f32.mrb[0].mxu0
        %1809 = vmatprep.mubr.f32.mxu0 %v1308
        %1810 = vmatmul.mubr.f32.gmra.mrb[0].mxu0 %v1276
        %v1811 = vpop.f32.mrb[0].mxu0
        %v1812 = vadd.f32 %v1587, %v1811
        %v1813 = vpop.f32.mrb[0].mxu0
        %1814 = vmatprep.mubr.f32.mxu0 %v1309
        %1815 = vmatmul.mubr.f32.gmra.mrb[0].mxu0 %v1277
        %v1816 = vpop.f32.mrb[0].mxu0
        %v1817 = vadd.f32 %v1592, %v1816
        %v1818 = vpop.f32.mrb[0].mxu0
        %1819 = vmatprep.mubr.f32.mxu0 %v1310
        %1820 = vmatmul.mubr.f32.gmra.mrb[0].mxu0 %v1278
        %v1821 = vpop.f32.mrb[0].mxu0
        %v1822 = vadd.f32 %v1597, %v1821
        %v1823 = vpop.f32.mrb[0].mxu0
        %1824 = vdwg.mxu0
        %vm1825 = vcmask 64512
        %1826 = vst.msk [vmem:[%s347] sm:$0xff] %vm1825, %v1667
        %1827 = vst.msk [vmem:[%s347 + $0x8] sm:$0xff] %vm1825, %v1672
        %1828 = vst.msk [vmem:[%s347 + $0x10] sm:$0xff] %vm1825, %v1677
        %1829 = vst.msk [vmem:[%s347 + $0x18] sm:$0xff] %vm1825, %v1682
        %1830 = vst.msk [vmem:[%s347 + $0x20] sm:$0xff] %vm1825, %v1687
        %1831 = vst.msk [vmem:[%s347 + $0x28] sm:$0xff] %vm1825, %v1692
        %1832 = vst.msk [vmem:[%s347 + $0x30] sm:$0xff] %vm1825, %v1697
        %1833 = vst.msk [vmem:[%s347 + $0x38] sm:$0xff] %vm1825, %v1702
        %1834 = vst.msk [vmem:[%s347 + $0x40] sm:$0xff] %vm1825, %v1707
        %1835 = vst.msk [vmem:[%s347 + $0x48] sm:$0xff] %vm1825, %v1712
        %1836 = vst.msk [vmem:[%s347 + $0x50] sm:$0xff] %vm1825, %v1717
        %1837 = vst.msk [vmem:[%s347 + $0x58] sm:$0xff] %vm1825, %v1722
        %1838 = vst.msk [vmem:[%s347 + $0x60] sm:$0xff] %vm1825, %v1727
        %1839 = vst.msk [vmem:[%s347 + $0x68] sm:$0xff] %vm1825, %v1732
        %1840 = vst.msk [vmem:[%s347 + $0x70] sm:$0xff] %vm1825, %v1737
        %1841 = vst.msk [vmem:[%s347 + $0x78] sm:$0xff] %vm1825, %v1742
        %1842 = vst.msk [vmem:[%s347 + $0x80] sm:$0xff] %vm1825, %v1747
        %1843 = vst.msk [vmem:[%s347 + $0x88] sm:$0xff] %vm1825, %v1752
        %1844 = vst.msk [vmem:[%s347 + $0x90] sm:$0xff] %vm1825, %v1757
        %1845 = vst.msk [vmem:[%s347 + $0x98] sm:$0xff] %vm1825, %v1762
        %1846 = vst.msk [vmem:[%s347 + $0xa0] sm:$0xff] %vm1825, %v1767
        %1847 = vst.msk [vmem:[%s347 + $0xa8] sm:$0xff] %vm1825, %v1772
        %1848 = vst.msk [vmem:[%s347 + $0xb0] sm:$0xff] %vm1825, %v1777
        %1849 = vst.msk [vmem:[%s347 + $0xb8] sm:$0xff] %vm1825, %v1782
        %1850 = vst.msk [vmem:[%s347 + $0xc0] sm:$0xff] %vm1825, %v1787
        %1851 = vst.msk [vmem:[%s347 + $0xc8] sm:$0xff] %vm1825, %v1792
        %1852 = vst.msk [vmem:[%s347 + $0xd0] sm:$0xff] %vm1825, %v1797
        %1853 = vst.msk [vmem:[%s347 + $0xd8] sm:$0xff] %vm1825, %v1802
        %1854 = vst.msk [vmem:[%s347 + $0xe0] sm:$0xff] %vm1825, %v1807
        %1855 = vst.msk [vmem:[%s347 + $0xe8] sm:$0xff] %vm1825, %v1812
        %1856 = vst.msk [vmem:[%s347 + $0xf0] sm:$0xff] %vm1825, %v1817
        %1857 = vst.msk [vmem:[%s347 + $0xf8] sm:$0xff] %vm1825, %v1822
        %s1858 = smul.u32 32, %s22
        %p1859 = scmp.lt.s32.totalorder %s1858, 63
        %s1860 = scalar_select %p1859, %s1858, 63
        %s1861 = smul.addr %s1860, 8
        %s1862 = scalar_lea.vmem %s5, %s1861
        // Predicated region
        $region53: #{tpu_custom_call.1} parent=39 // pred_check
          %p1863 = pneg %p160
        $region54: #{tpu_custom_call.1} parent=39 // pred_check_branch
          %1865 = sbr.rel (%p1863) target = $region56
        $region55: #{tpu_custom_call.1} parent=39 // pred_region
          %s1866 = smul.u32 32, %s22
        $region56: #{tpu_custom_call.1} parent=39 // pred_fallthru
          _
      $region40: #{tpu_custom_call.1} parent=5 // pred_fallthru
        _
      %p1867 = scmp.le.s32.totalorder 2, %s17
      // Predicated region
      $region57: #{tpu_custom_call.1} parent=5 // pred_check
        %p1868 = pneg %p1867
      $region58: #{tpu_custom_call.1} parent=5 // pred_check_branch
        %1870 = sbr.rel (%p1868) target = $region60
      $region59: #{tpu_custom_call.1} parent=5 // pred_region
        %s1871 = ssub.s32 %s17, 2
        // Predicated region
        $region61: #{tpu_custom_call.1} parent=59 // pred_check
          %p1872 = pneg %p166
        $region62: #{tpu_custom_call.1} parent=59 // pred_check_branch
          %1874 = sbr.rel (%p1872) target = $region64
        $region63: #{tpu_custom_call.1} parent=59 // pred_region
          %s1875 = smul.u32 32, %s23
          %p1876 = scmp.lt.s32.totalorder %s1875, 63
          %s1877 = scalar_select %p1876, %s1875, 63
          %s1878 = smul.addr %s1877, 8
          %s1879 = scalar_lea.vmem %s5, %s1878
        $region64: #{tpu_custom_call.1} parent=59 // pred_fallthru
          _
      $region60: #{tpu_custom_call.1} parent=5 // pred_fallthru
        _
    $region6: #{tpu_custom_call.1} parent=1 // loop_footer
      %s21 = sadd.s32 1, %s17
    $region7: #{tpu_custom_call.1} parent=1 // loop_footer_branch
      %16 = sbr.rel target = $region3
    $region8: #{tpu_custom_call.1} parent=1 // loop_exit
      _
    %1880 = vsyncpa [#allocation3], 1
    %s1881 = scalar_lea.sflag [#allocation3], 1
    %1882 = vsyncpa %s1881, 1
    %1883 = vsyncpa [#allocation5], 1
    %s1884 = scalar_lea.sflag [#allocation5], 1
    %1885 = vsyncpa %s1884, 1

</llo_original>
